<compile_context>
chip_gen: v7x
topology: tpu7x:2x2x1
jax: 0.10.0
libtpu: 0.0.40
codegen_flags: <defaults>
</compile_context>

<pallas_src>
import jax
import jax.numpy as jnp
from jax import lax
from jax.experimental import pallas as pl
from jax.experimental.pallas import tpu as pltpu


def _lstm_kernel(xf_ref, h0_ref, c0_ref,
                 wih_ref, whh_ref, b_ref,
                 fc1w_ref, fc1b_ref, fc2w_ref, fc2b_ref,
                 out_ref, rnn_ref,
                 proj_sc):
    TB, _ = xf_ref.shape
    B, H = h0_ref.shape
    T = TB // B

    # (1) Input projection for ALL timesteps as one batched matmul (M = T*B),
    #     with the combined bias (b_ih + b_hh) folded in.  Lives in VMEM.
    proj_sc[...] = (
        jnp.dot(xf_ref[...], wih_ref[...], preferred_element_type=jnp.float32)
        + b_ref[...])

    # Hoist loop-invariant loads / constants out of the recurrence
    # (JAX does not CSE broadcast_in_dim -> build masks exactly once).
    whh = whh_ref[...]
    lane = lax.broadcasted_iota(jnp.int32, (B, 4 * H), 1)
    is_g = (lane >= 2 * H) & (lane < 3 * H)          # 'g' gate segment [2H, 3H)
    pre_scale = jnp.where(is_g, 2.0, 1.0).astype(jnp.float32)   # x -> 2x on g
    post_shift = jnp.where(is_g, -1.0, 0.0).astype(jnp.float32)  # 2s - 1 on g

    def step(t, carry):
        h, c = carry
        row = t * B
        gates = proj_sc[pl.ds(row, B), :] + jnp.dot(
            h, whh, preferred_element_type=jnp.float32)          # (B, 4H)
        # One EUP push for the whole fused gate tile:
        #   i, f, o -> sigmoid(x);   g -> 2*sigmoid(2x) - 1 == tanh(x)
        act = jax.nn.sigmoid(gates * pre_scale) * pre_scale + post_shift
        i_g = act[:, 0:H]
        f_g = act[:, H:2 * H]
        g_g = act[:, 2 * H:3 * H]
        o_g = act[:, 3 * H:4 * H]
        c_new = f_g * c + i_g * g_g
        h_new = o_g * jnp.tanh(c_new)
        # torch.tanh(rnn_out): store into the VMEM-resident output slab; the
        # single HBM writeback happens once when the invocation ends.
        rnn_ref[pl.ds(row, B), :] = jnp.tanh(h_new)
        return h_new, c_new

    lax.fori_loop(0, T, step, (h0_ref[...], c0_ref[...]), unroll=True)

    # FC head on tanh(rnn_out)[:, -1, :] -- reuse the last stored row block
    # (already tanh'd) instead of recomputing.
    last = rnn_ref[pl.ds((T - 1) * B, B), :]
    z1 = jnp.dot(last, fc1w_ref[...],
                 preferred_element_type=jnp.float32) + fc1b_ref[...]
    out_ref[...] = (jnp.dot(z1, fc2w_ref[...],
                            preferred_element_type=jnp.float32) + fc2b_ref[...])


def lstm_network_forward(x, h0, c0, params):
    """x: (B, T, I) float32, h0/c0: (1, B, H).  Returns (out (B,O), rnn_out (B,T,H))."""
    B, T, I = x.shape
    H = params["w_hh"].shape[0]
    O = params["fc2_w"].shape[1]

    # Time-major, flattened to 2D so the recurrence addresses rows [t*B, t*B+B).
    x_flat = jnp.transpose(x, (1, 0, 2)).reshape(T * B, I)
    h0_2d = h0[0]
    c0_2d = c0[0]

    full = lambda i: (0, 0)

    out, rnn_flat = pl.pallas_call(
        _lstm_kernel,
        out_shape=(
            jax.ShapeDtypeStruct((B, O), jnp.float32),
            jax.ShapeDtypeStruct((T * B, H), jnp.float32),
        ),
        grid_spec=pltpu.PrefetchScalarGridSpec(
            num_scalar_prefetch=0,
            grid=(1,),                                   # whole sequence in one invocation
            in_specs=[
                pl.BlockSpec((T * B, I), full),          # x, time-major flat
                pl.BlockSpec((B, H), full),              # h0
                pl.BlockSpec((B, H), full),              # c0
                pl.BlockSpec((I, 4 * H), full),          # W_ih^T
                pl.BlockSpec((H, 4 * H), full),          # W_hh^T
                pl.BlockSpec((1, 4 * H), full),          # b_ih + b_hh
                pl.BlockSpec((H, H), full),              # fc1 W^T
                pl.BlockSpec((1, H), full),              # fc1 b
                pl.BlockSpec((H, O), full),              # fc2 W^T
                pl.BlockSpec((1, O), full),              # fc2 b
            ],
            out_specs=[
                pl.BlockSpec((B, O), full),              # out
                pl.BlockSpec((T * B, H), full),          # tanh(rnn_out), time-major flat
            ],
            scratch_shapes=[
                pltpu.VMEM((T * B, 4 * H), jnp.float32), # x-projection slab
            ],
        ),
        compiler_params=pltpu.CompilerParams(
            dimension_semantics=("arbitrary",)),
    )(x_flat, h0_2d, c0_2d,
      params["w_ih"], params["w_hh"], params["b"],
      params["fc1_w"], params["fc1_b"], params["fc2_w"], params["fc2_b"])

    # Back to batch_first (B, T, H).  TODO(synk): consumers that accept a
    # time-major rnn_out could skip this extra HBM pass.
    rnn_out = jnp.transpose(rnn_flat.reshape(T, B, H), (1, 0, 2))
    return out, rnn_out


def _reference_forward(x, h0, c0, params):
    """Pure-JAX reference matching PyTorch LSTM semantics."""
    B, T, I = x.shape
    H = params["w_hh"].shape[0]

    def step(carry, x_t):
        h, c = carry
        gates = x_t @ params["w_ih"] + h @ params["w_hh"] + params["b"][0]
        i_g = jax.nn.sigmoid(gates[:, 0:H])
        f_g = jax.nn.sigmoid(gates[:, H:2 * H])
        g_g = jnp.tanh(gates[:, 2 * H:3 * H])
        o_g = jax.nn.sigmoid(gates[:, 3 * H:4 * H])
        c_new = f_g * c + i_g * g_g
        h_new = o_g * jnp.tanh(c_new)
        return (h_new, c_new), h_new

    (_, _), hs = lax.scan(step, (h0[0], c0[0]), jnp.transpose(x, (1, 0, 2)))
    rnn_out = jnp.tanh(jnp.transpose(hs, (1, 0, 2)))
    out = rnn_out[:, -1, :] @ params["fc1_w"] + params["fc1_b"][0]
    out = out @ params["fc2_w"] + params["fc2_b"][0]
    return out, rnn_out


def init_params(key, input_size, hidden_size, output_size):
    """Deterministic synthetic init (uniform(-1/sqrt(H), 1/sqrt(H)), like PyTorch)."""
    ks = jax.random.split(key, 10)
    s = 1.0 / jnp.sqrt(hidden_size)
    u = lambda k, shape: jax.random.uniform(k, shape, jnp.float32, -s, s)
    return {
        # pre-transposed: x @ w_ih, h @ w_hh
        "w_ih": u(ks[0], (input_size, 4 * hidden_size)),
        "w_hh": u(ks[1], (hidden_size, 4 * hidden_size)),
        "b": u(ks[2], (1, 4 * hidden_size)) + u(ks[3], (1, 4 * hidden_size)),  # b_ih + b_hh
        "fc1_w": u(ks[4], (hidden_size, hidden_size)),
        "fc1_b": u(ks[5], (1, hidden_size)),
        "fc2_w": u(ks[6], (hidden_size, output_size)),
        "fc2_b": u(ks[7], (1, output_size)),
    }


if __name__ == "__main__":
    B, T, INPUT_SIZE, HIDDEN, OUT = 2, 8, 16, 32, 8
    key = jax.random.PRNGKey(0)
    kx, kp = jax.random.split(key)

    x = jax.random.normal(kx, (B, T, INPUT_SIZE), jnp.float32)
    # initHidden(Batch_Size): zeros of shape (n_layers, B, H)
    h0 = jnp.zeros((1, B, HIDDEN), jnp.float32)
    c0 = jnp.zeros((1, B, HIDDEN), jnp.float32)
    params = init_params(kp, INPUT_SIZE, HIDDEN, OUT)

    out, rnn_out = jax.block_until_ready(lstm_network_forward(x, h0, c0, params))

    out_ref, rnn_ref = _reference_forward(x, h0, c0, params)
    assert out.shape == (B, OUT) and rnn_out.shape == (B, T, HIDDEN)
    assert jnp.allclose(out, out_ref, atol=1e-5, rtol=1e-5)
    assert jnp.allclose(rnn_out, rnn_ref, atol=1e-5, rtol=1e-5)

    print("KERNEL_OK")
</pallas_src>

<mosaic_0001>
module attributes {stable_mosaic.version = 11 : i64} {
  func.func @_lstm_kernel(%arg0: i32, %arg1: memref<16x16xf32, #tpu.memory_space<vmem>>, %arg2: memref<2x32xf32, #tpu.memory_space<vmem>>, %arg3: memref<2x32xf32, #tpu.memory_space<vmem>>, %arg4: memref<16x128xf32, #tpu.memory_space<vmem>>, %arg5: memref<32x128xf32, #tpu.memory_space<vmem>>, %arg6: memref<1x128xf32, #tpu.memory_space<vmem>>, %arg7: memref<32x32xf32, #tpu.memory_space<vmem>>, %arg8: memref<1x32xf32, #tpu.memory_space<vmem>>, %arg9: memref<32x8xf32, #tpu.memory_space<vmem>>, %arg10: memref<1x8xf32, #tpu.memory_space<vmem>>, %arg11: memref<2x8xf32, #tpu.memory_space<vmem>>, %arg12: memref<16x32xf32, #tpu.memory_space<vmem>>, %arg13: memref<16x128xf32, #tpu.memory_space<vmem>>) attributes {dimension_semantics = [#tpu.dimension_semantics<arbitrary>], iteration_bounds = array<i64: 1>, scalar_prefetch = 0 : i64, scratch_operands = 1 : i64, tpu.core_type = #tpu.core_type<tc>, window_params = [{pipeline_mode = #tpu.pipeline_mode<synchronous>, transform_indices = @transform_0, window_bounds = array<i64: 16, 16>}, {pipeline_mode = #tpu.pipeline_mode<synchronous>, transform_indices = @transform_1, window_bounds = array<i64: 2, 32>}, {pipeline_mode = #tpu.pipeline_mode<synchronous>, transform_indices = @transform_2, window_bounds = array<i64: 2, 32>}, {pipeline_mode = #tpu.pipeline_mode<synchronous>, transform_indices = @transform_3, window_bounds = array<i64: 16, 128>}, {pipeline_mode = #tpu.pipeline_mode<synchronous>, transform_indices = @transform_4, window_bounds = array<i64: 32, 128>}, {pipeline_mode = #tpu.pipeline_mode<synchronous>, transform_indices = @transform_5, window_bounds = array<i64: 1, 128>}, {pipeline_mode = #tpu.pipeline_mode<synchronous>, transform_indices = @transform_6, window_bounds = array<i64: 32, 32>}, {pipeline_mode = #tpu.pipeline_mode<synchronous>, transform_indices = @transform_7, window_bounds = array<i64: 1, 32>}, {pipeline_mode = #tpu.pipeline_mode<synchronous>, transform_indices = @transform_8, window_bounds = array<i64: 32, 8>}, {pipeline_mode = #tpu.pipeline_mode<synchronous>, transform_indices = @transform_9, window_bounds = array<i64: 1, 8>}, {pipeline_mode = #tpu.pipeline_mode<synchronous>, transform_indices = @transform_10, window_bounds = array<i64: 2, 8>}, {pipeline_mode = #tpu.pipeline_mode<synchronous>, transform_indices = @transform_11, window_bounds = array<i64: 16, 32>}]} {
    %c0 = arith.constant 0 : index
    %c0_0 = arith.constant 0 : index
    %0 = vector.load %arg1[%c0, %c0_0] : memref<16x16xf32, #tpu.memory_space<vmem>>, vector<16x16xf32>
    %c0_1 = arith.constant 0 : index
    %c0_2 = arith.constant 0 : index
    %1 = vector.load %arg4[%c0_1, %c0_2] : memref<16x128xf32, #tpu.memory_space<vmem>>, vector<16x128xf32>
    %cst = arith.constant dense<0.000000e+00> : vector<16x128xf32>
    %2 = tpu.matmul %0, %1, %cst {dimension_numbers = #tpu.dot_dimension_numbers<[1], [0], [0], [1], [0, 0, 1, 1], [], []>} : vector<16x16xf32>, vector<16x128xf32>, vector<16x128xf32> -> vector<16x128xf32>
    %c0_3 = arith.constant 0 : index
    %c0_4 = arith.constant 0 : index
    %3 = vector.load %arg6[%c0_3, %c0_4] : memref<1x128xf32, #tpu.memory_space<vmem>>, vector<1x128xf32>
    %4 = vector.broadcast %3 : vector<1x128xf32> to vector<16x128xf32>
    %5 = arith.addf %2, %4 : vector<16x128xf32>
    %c0_5 = arith.constant 0 : index
    %c0_6 = arith.constant 0 : index
    %6 = vector.load %arg13[%c0_5, %c0_6] : memref<16x128xf32, #tpu.memory_space<vmem>>, vector<16x128xf32>
    tpu.vector_store %arg13[%c0_5, %c0_6], %5 {strides = array<i32>} : memref<16x128xf32, #tpu.memory_space<vmem>>, vector<16x128xf32>,
    %c0_7 = arith.constant 0 : index
    %c0_8 = arith.constant 0 : index
    %7 = vector.load %arg5[%c0_7, %c0_8] : memref<32x128xf32, #tpu.memory_space<vmem>>, vector<32x128xf32>
    %8 = tpu.iota {dimensions = array<i32: 1>} : vector<2x128xi32>
    %c64_i32 = arith.constant 64 : i32
    %9 = vector.broadcast %c64_i32 : i32 to vector<2x128xi32>
    %10 = arith.cmpi sge, %8, %9 : vector<2x128xi32>
    %c96_i32 = arith.constant 96 : i32
    %11 = vector.broadcast %c96_i32 : i32 to vector<2x128xi32>
    %12 = arith.cmpi slt, %8, %11 : vector<2x128xi32>
    %13 = arith.andi %10, %12 : vector<2x128xi1>
    %cst_9 = arith.constant 2.000000e+00 : f32
    %cst_10 = arith.constant 1.000000e+00 : f32
    %14 = vector.broadcast %cst_9 : f32 to vector<2x128xf32>
    %15 = vector.broadcast %cst_10 : f32 to vector<2x128xf32>
    %16 = arith.select %13, %14, %15 : vector<2x128xi1>, vector<2x128xf32>
    %cst_11 = arith.constant -1.000000e+00 : f32
    %cst_12 = arith.constant 0.000000e+00 : f32
    %17 = vector.broadcast %cst_11 : f32 to vector<2x128xf32>
    %18 = vector.broadcast %cst_12 : f32 to vector<2x128xf32>
    %19 = arith.select %13, %17, %18 : vector<2x128xi1>, vector<2x128xf32>
    %c0_13 = arith.constant 0 : index
    %c0_14 = arith.constant 0 : index
    %20 = vector.load %arg2[%c0_13, %c0_14] : memref<2x32xf32, #tpu.memory_space<vmem>>, vector<2x32xf32>
    %c0_15 = arith.constant 0 : index
    %c0_16 = arith.constant 0 : index
    %21 = vector.load %arg3[%c0_15, %c0_16] : memref<2x32xf32, #tpu.memory_space<vmem>>, vector<2x32xf32>
    %c0_i32 = arith.constant 0 : i32
    %c2_i32 = arith.constant 2 : i32
    %22 = arith.muli %c0_i32, %c2_i32 : i32
    %23 = arith.index_cast %22 : i32 to index
    %c0_17 = arith.constant 0 : index
    %24 = vector.load %arg13[%23, %c0_17] : memref<16x128xf32, #tpu.memory_space<vmem>>, vector<2x128xf32>
    %cst_18 = arith.constant dense<0.000000e+00> : vector<2x128xf32>
    %25 = tpu.matmul %20, %7, %cst_18 {dimension_numbers = #tpu.dot_dimension_numbers<[1], [0], [0], [1], [0, 0, 1, 1], [], []>} : vector<2x32xf32>, vector<32x128xf32>, vector<2x128xf32> -> vector<2x128xf32>
    %26 = arith.addf %24, %25 : vector<2x128xf32>
    %27 = arith.mulf %26, %16 : vector<2x128xf32>
    %28 = arith.negf %27 : vector<2x128xf32>
    %29 = math.exp %28 : vector<2x128xf32>
    %cst_19 = arith.constant 1.000000e+00 : f32
    %30 = vector.broadcast %cst_19 : f32 to vector<2x128xf32>
    %31 = arith.addf %30, %29 : vector<2x128xf32>
    %32 = arith.divf %30, %31 : vector<2x128xf32>
    %33 = arith.mulf %32, %16 : vector<2x128xf32>
    %34 = arith.addf %33, %19 : vector<2x128xf32>
    %35 = vector.extract_strided_slice %34 {offsets = [0, 0], sizes = [2, 32], strides = [1, 1]} : vector<2x128xf32> to vector<2x32xf32>
    %36 = vector.extract_strided_slice %34 {offsets = [0, 32], sizes = [2, 32], strides = [1, 1]} : vector<2x128xf32> to vector<2x32xf32>
    %37 = vector.extract_strided_slice %34 {offsets = [0, 64], sizes = [2, 32], strides = [1, 1]} : vector<2x128xf32> to vector<2x32xf32>
    %38 = vector.extract_strided_slice %34 {offsets = [0, 96], sizes = [2, 32], strides = [1, 1]} : vector<2x128xf32> to vector<2x32xf32>
    %39 = arith.mulf %36, %21 : vector<2x32xf32>
    %40 = arith.mulf %35, %37 : vector<2x32xf32>
    %41 = arith.addf %39, %40 : vector<2x32xf32>
    %42 = math.tanh %41 : vector<2x32xf32>
    %43 = arith.mulf %38, %42 : vector<2x32xf32>
    %44 = math.tanh %43 : vector<2x32xf32>
    %45 = arith.index_cast %22 : i32 to index
    %c0_20 = arith.constant 0 : index
    %46 = vector.load %arg12[%45, %c0_20] : memref<16x32xf32, #tpu.memory_space<vmem>>, vector<2x32xf32>
    tpu.vector_store %arg12[%45, %c0_20], %44 {strides = array<i32>} : memref<16x32xf32, #tpu.memory_space<vmem>>, vector<2x32xf32>,
    %c1_i32 = arith.constant 1 : i32
    %c2_i32_21 = arith.constant 2 : i32
    %47 = arith.muli %c1_i32, %c2_i32_21 : i32
    %48 = arith.index_cast %47 : i32 to index
    %c0_22 = arith.constant 0 : index
    %49 = vector.load %arg13[%48, %c0_22] : memref<16x128xf32, #tpu.memory_space<vmem>>, vector<2x128xf32>
    %cst_23 = arith.constant dense<0.000000e+00> : vector<2x128xf32>
    %50 = tpu.matmul %43, %7, %cst_23 {dimension_numbers = #tpu.dot_dimension_numbers<[1], [0], [0], [1], [0, 0, 1, 1], [], []>} : vector<2x32xf32>, vector<32x128xf32>, vector<2x128xf32> -> vector<2x128xf32>
    %51 = arith.addf %49, %50 : vector<2x128xf32>
    %52 = arith.mulf %51, %16 : vector<2x128xf32>
    %53 = arith.negf %52 : vector<2x128xf32>
    %54 = math.exp %53 : vector<2x128xf32>
    %cst_24 = arith.constant 1.000000e+00 : f32
    %55 = vector.broadcast %cst_24 : f32 to vector<2x128xf32>
    %56 = arith.addf %55, %54 : vector<2x128xf32>
    %57 = arith.divf %55, %56 : vector<2x128xf32>
    %58 = arith.mulf %57, %16 : vector<2x128xf32>
    %59 = arith.addf %58, %19 : vector<2x128xf32>
    %60 = vector.extract_strided_slice %59 {offsets = [0, 0], sizes = [2, 32], strides = [1, 1]} : vector<2x128xf32> to vector<2x32xf32>
    %61 = vector.extract_strided_slice %59 {offsets = [0, 32], sizes = [2, 32], strides = [1, 1]} : vector<2x128xf32> to vector<2x32xf32>
    %62 = vector.extract_strided_slice %59 {offsets = [0, 64], sizes = [2, 32], strides = [1, 1]} : vector<2x128xf32> to vector<2x32xf32>
    %63 = vector.extract_strided_slice %59 {offsets = [0, 96], sizes = [2, 32], strides = [1, 1]} : vector<2x128xf32> to vector<2x32xf32>
    %64 = arith.mulf %61, %41 : vector<2x32xf32>
    %65 = arith.mulf %60, %62 : vector<2x32xf32>
    %66 = arith.addf %64, %65 : vector<2x32xf32>
    %67 = math.tanh %66 : vector<2x32xf32>
    %68 = arith.mulf %63, %67 : vector<2x32xf32>
    %69 = math.tanh %68 : vector<2x32xf32>
    %70 = arith.index_cast %47 : i32 to index
    %c0_25 = arith.constant 0 : index
    %71 = vector.load %arg12[%70, %c0_25] : memref<16x32xf32, #tpu.memory_space<vmem>>, vector<2x32xf32>
    tpu.vector_store %arg12[%70, %c0_25], %69 {strides = array<i32>} : memref<16x32xf32, #tpu.memory_space<vmem>>, vector<2x32xf32>,
    %c2_i32_26 = arith.constant 2 : i32
    %c2_i32_27 = arith.constant 2 : i32
    %72 = arith.muli %c2_i32_26, %c2_i32_27 : i32
    %73 = arith.index_cast %72 : i32 to index
    %c0_28 = arith.constant 0 : index
    %74 = vector.load %arg13[%73, %c0_28] : memref<16x128xf32, #tpu.memory_space<vmem>>, vector<2x128xf32>
    %cst_29 = arith.constant dense<0.000000e+00> : vector<2x128xf32>
    %75 = tpu.matmul %68, %7, %cst_29 {dimension_numbers = #tpu.dot_dimension_numbers<[1], [0], [0], [1], [0, 0, 1, 1], [], []>} : vector<2x32xf32>, vector<32x128xf32>, vector<2x128xf32> -> vector<2x128xf32>
    %76 = arith.addf %74, %75 : vector<2x128xf32>
    %77 = arith.mulf %76, %16 : vector<2x128xf32>
    %78 = arith.negf %77 : vector<2x128xf32>
    %79 = math.exp %78 : vector<2x128xf32>
    %cst_30 = arith.constant 1.000000e+00 : f32
    %80 = vector.broadcast %cst_30 : f32 to vector<2x128xf32>
    %81 = arith.addf %80, %79 : vector<2x128xf32>
    %82 = arith.divf %80, %81 : vector<2x128xf32>
    %83 = arith.mulf %82, %16 : vector<2x128xf32>
    %84 = arith.addf %83, %19 : vector<2x128xf32>
    %85 = vector.extract_strided_slice %84 {offsets = [0, 0], sizes = [2, 32], strides = [1, 1]} : vector<2x128xf32> to vector<2x32xf32>
    %86 = vector.extract_strided_slice %84 {offsets = [0, 32], sizes = [2, 32], strides = [1, 1]} : vector<2x128xf32> to vector<2x32xf32>
    %87 = vector.extract_strided_slice %84 {offsets = [0, 64], sizes = [2, 32], strides = [1, 1]} : vector<2x128xf32> to vector<2x32xf32>
    %88 = vector.extract_strided_slice %84 {offsets = [0, 96], sizes = [2, 32], strides = [1, 1]} : vector<2x128xf32> to vector<2x32xf32>
    %89 = arith.mulf %86, %66 : vector<2x32xf32>
    %90 = arith.mulf %85, %87 : vector<2x32xf32>
    %91 = arith.addf %89, %90 : vector<2x32xf32>
    %92 = math.tanh %91 : vector<2x32xf32>
    %93 = arith.mulf %88, %92 : vector<2x32xf32>
    %94 = math.tanh %93 : vector<2x32xf32>
    %95 = arith.index_cast %72 : i32 to index
    %c0_31 = arith.constant 0 : index
    %96 = vector.load %arg12[%95, %c0_31] : memref<16x32xf32, #tpu.memory_space<vmem>>, vector<2x32xf32>
    tpu.vector_store %arg12[%95, %c0_31], %94 {strides = array<i32>} : memref<16x32xf32, #tpu.memory_space<vmem>>, vector<2x32xf32>,
    %c3_i32 = arith.constant 3 : i32
    %c2_i32_32 = arith.constant 2 : i32
    %97 = arith.muli %c3_i32, %c2_i32_32 : i32
    %98 = arith.index_cast %97 : i32 to index
    %c0_33 = arith.constant 0 : index
    %99 = vector.load %arg13[%98, %c0_33] : memref<16x128xf32, #tpu.memory_space<vmem>>, vector<2x128xf32>
    %cst_34 = arith.constant dense<0.000000e+00> : vector<2x128xf32>
    %100 = tpu.matmul %93, %7, %cst_34 {dimension_numbers = #tpu.dot_dimension_numbers<[1], [0], [0], [1], [0, 0, 1, 1], [], []>} : vector<2x32xf32>, vector<32x128xf32>, vector<2x128xf32> -> vector<2x128xf32>
    %101 = arith.addf %99, %100 : vector<2x128xf32>
    %102 = arith.mulf %101, %16 : vector<2x128xf32>
    %103 = arith.negf %102 : vector<2x128xf32>
    %104 = math.exp %103 : vector<2x128xf32>
    %cst_35 = arith.constant 1.000000e+00 : f32
    %105 = vector.broadcast %cst_35 : f32 to vector<2x128xf32>
    %106 = arith.addf %105, %104 : vector<2x128xf32>
    %107 = arith.divf %105, %106 : vector<2x128xf32>
    %108 = arith.mulf %107, %16 : vector<2x128xf32>
    %109 = arith.addf %108, %19 : vector<2x128xf32>
    %110 = vector.extract_strided_slice %109 {offsets = [0, 0], sizes = [2, 32], strides = [1, 1]} : vector<2x128xf32> to vector<2x32xf32>
    %111 = vector.extract_strided_slice %109 {offsets = [0, 32], sizes = [2, 32], strides = [1, 1]} : vector<2x128xf32> to vector<2x32xf32>
    %112 = vector.extract_strided_slice %109 {offsets = [0, 64], sizes = [2, 32], strides = [1, 1]} : vector<2x128xf32> to vector<2x32xf32>
    %113 = vector.extract_strided_slice %109 {offsets = [0, 96], sizes = [2, 32], strides = [1, 1]} : vector<2x128xf32> to vector<2x32xf32>
    %114 = arith.mulf %111, %91 : vector<2x32xf32>
    %115 = arith.mulf %110, %112 : vector<2x32xf32>
    %116 = arith.addf %114, %115 : vector<2x32xf32>
    %117 = math.tanh %116 : vector<2x32xf32>
    %118 = arith.mulf %113, %117 : vector<2x32xf32>
    %119 = math.tanh %118 : vector<2x32xf32>
    %120 = arith.index_cast %97 : i32 to index
    %c0_36 = arith.constant 0 : index
    %121 = vector.load %arg12[%120, %c0_36] : memref<16x32xf32, #tpu.memory_space<vmem>>, vector<2x32xf32>
    tpu.vector_store %arg12[%120, %c0_36], %119 {strides = array<i32>} : memref<16x32xf32, #tpu.memory_space<vmem>>, vector<2x32xf32>,
    %c4_i32 = arith.constant 4 : i32
    %c2_i32_37 = arith.constant 2 : i32
    %122 = arith.muli %c4_i32, %c2_i32_37 : i32
    %123 = arith.index_cast %122 : i32 to index
    %c0_38 = arith.constant 0 : index
    %124 = vector.load %arg13[%123, %c0_38] : memref<16x128xf32, #tpu.memory_space<vmem>>, vector<2x128xf32>
    %cst_39 = arith.constant dense<0.000000e+00> : vector<2x128xf32>
    %125 = tpu.matmul %118, %7, %cst_39 {dimension_numbers = #tpu.dot_dimension_numbers<[1], [0], [0], [1], [0, 0, 1, 1], [], []>} : vector<2x32xf32>, vector<32x128xf32>, vector<2x128xf32> -> vector<2x128xf32>
    %126 = arith.addf %124, %125 : vector<2x128xf32>
    %127 = arith.mulf %126, %16 : vector<2x128xf32>
    %128 = arith.negf %127 : vector<2x128xf32>
    %129 = math.exp %128 : vector<2x128xf32>
    %cst_40 = arith.constant 1.000000e+00 : f32
    %130 = vector.broadcast %cst_40 : f32 to vector<2x128xf32>
    %131 = arith.addf %130, %129 : vector<2x128xf32>
    %132 = arith.divf %130, %131 : vector<2x128xf32>
    %133 = arith.mulf %132, %16 : vector<2x128xf32>
    %134 = arith.addf %133, %19 : vector<2x128xf32>
    %135 = vector.extract_strided_slice %134 {offsets = [0, 0], sizes = [2, 32], strides = [1, 1]} : vector<2x128xf32> to vector<2x32xf32>
    %136 = vector.extract_strided_slice %134 {offsets = [0, 32], sizes = [2, 32], strides = [1, 1]} : vector<2x128xf32> to vector<2x32xf32>
    %137 = vector.extract_strided_slice %134 {offsets = [0, 64], sizes = [2, 32], strides = [1, 1]} : vector<2x128xf32> to vector<2x32xf32>
    %138 = vector.extract_strided_slice %134 {offsets = [0, 96], sizes = [2, 32], strides = [1, 1]} : vector<2x128xf32> to vector<2x32xf32>
    %139 = arith.mulf %136, %116 : vector<2x32xf32>
    %140 = arith.mulf %135, %137 : vector<2x32xf32>
    %141 = arith.addf %139, %140 : vector<2x32xf32>
    %142 = math.tanh %141 : vector<2x32xf32>
    %143 = arith.mulf %138, %142 : vector<2x32xf32>
    %144 = math.tanh %143 : vector<2x32xf32>
    %145 = arith.index_cast %122 : i32 to index
    %c0_41 = arith.constant 0 : index
    %146 = vector.load %arg12[%145, %c0_41] : memref<16x32xf32, #tpu.memory_space<vmem>>, vector<2x32xf32>
    tpu.vector_store %arg12[%145, %c0_41], %144 {strides = array<i32>} : memref<16x32xf32, #tpu.memory_space<vmem>>, vector<2x32xf32>,
    %c5_i32 = arith.constant 5 : i32
    %c2_i32_42 = arith.constant 2 : i32
    %147 = arith.muli %c5_i32, %c2_i32_42 : i32
    %148 = arith.index_cast %147 : i32 to index
    %c0_43 = arith.constant 0 : index
    %149 = vector.load %arg13[%148, %c0_43] : memref<16x128xf32, #tpu.memory_space<vmem>>, vector<2x128xf32>
    %cst_44 = arith.constant dense<0.000000e+00> : vector<2x128xf32>
    %150 = tpu.matmul %143, %7, %cst_44 {dimension_numbers = #tpu.dot_dimension_numbers<[1], [0], [0], [1], [0, 0, 1, 1], [], []>} : vector<2x32xf32>, vector<32x128xf32>, vector<2x128xf32> -> vector<2x128xf32>
    %151 = arith.addf %149, %150 : vector<2x128xf32>
    %152 = arith.mulf %151, %16 : vector<2x128xf32>
    %153 = arith.negf %152 : vector<2x128xf32>
    %154 = math.exp %153 : vector<2x128xf32>
    %cst_45 = arith.constant 1.000000e+00 : f32
    %155 = vector.broadcast %cst_45 : f32 to vector<2x128xf32>
    %156 = arith.addf %155, %154 : vector<2x128xf32>
    %157 = arith.divf %155, %156 : vector<2x128xf32>
    %158 = arith.mulf %157, %16 : vector<2x128xf32>
    %159 = arith.addf %158, %19 : vector<2x128xf32>
    %160 = vector.extract_strided_slice %159 {offsets = [0, 0], sizes = [2, 32], strides = [1, 1]} : vector<2x128xf32> to vector<2x32xf32>
    %161 = vector.extract_strided_slice %159 {offsets = [0, 32], sizes = [2, 32], strides = [1, 1]} : vector<2x128xf32> to vector<2x32xf32>
    %162 = vector.extract_strided_slice %159 {offsets = [0, 64], sizes = [2, 32], strides = [1, 1]} : vector<2x128xf32> to vector<2x32xf32>
    %163 = vector.extract_strided_slice %159 {offsets = [0, 96], sizes = [2, 32], strides = [1, 1]} : vector<2x128xf32> to vector<2x32xf32>
    %164 = arith.mulf %161, %141 : vector<2x32xf32>
    %165 = arith.mulf %160, %162 : vector<2x32xf32>
    %166 = arith.addf %164, %165 : vector<2x32xf32>
    %167 = math.tanh %166 : vector<2x32xf32>
    %168 = arith.mulf %163, %167 : vector<2x32xf32>
    %169 = math.tanh %168 : vector<2x32xf32>
    %170 = arith.index_cast %147 : i32 to index
    %c0_46 = arith.constant 0 : index
    %171 = vector.load %arg12[%170, %c0_46] : memref<16x32xf32, #tpu.memory_space<vmem>>, vector<2x32xf32>
    tpu.vector_store %arg12[%170, %c0_46], %169 {strides = array<i32>} : memref<16x32xf32, #tpu.memory_space<vmem>>, vector<2x32xf32>,
    %c6_i32 = arith.constant 6 : i32
    %c2_i32_47 = arith.constant 2 : i32
    %172 = arith.muli %c6_i32, %c2_i32_47 : i32
    %173 = arith.index_cast %172 : i32 to index
    %c0_48 = arith.constant 0 : index
    %174 = vector.load %arg13[%173, %c0_48] : memref<16x128xf32, #tpu.memory_space<vmem>>, vector<2x128xf32>
    %cst_49 = arith.constant dense<0.000000e+00> : vector<2x128xf32>
    %175 = tpu.matmul %168, %7, %cst_49 {dimension_numbers = #tpu.dot_dimension_numbers<[1], [0], [0], [1], [0, 0, 1, 1], [], []>} : vector<2x32xf32>, vector<32x128xf32>, vector<2x128xf32> -> vector<2x128xf32>
    %176 = arith.addf %174, %175 : vector<2x128xf32>
    %177 = arith.mulf %176, %16 : vector<2x128xf32>
    %178 = arith.negf %177 : vector<2x128xf32>
    %179 = math.exp %178 : vector<2x128xf32>
    %cst_50 = arith.constant 1.000000e+00 : f32
    %180 = vector.broadcast %cst_50 : f32 to vector<2x128xf32>
    %181 = arith.addf %180, %179 : vector<2x128xf32>
    %182 = arith.divf %180, %181 : vector<2x128xf32>
    %183 = arith.mulf %182, %16 : vector<2x128xf32>
    %184 = arith.addf %183, %19 : vector<2x128xf32>
    %185 = vector.extract_strided_slice %184 {offsets = [0, 0], sizes = [2, 32], strides = [1, 1]} : vector<2x128xf32> to vector<2x32xf32>
    %186 = vector.extract_strided_slice %184 {offsets = [0, 32], sizes = [2, 32], strides = [1, 1]} : vector<2x128xf32> to vector<2x32xf32>
    %187 = vector.extract_strided_slice %184 {offsets = [0, 64], sizes = [2, 32], strides = [1, 1]} : vector<2x128xf32> to vector<2x32xf32>
    %188 = vector.extract_strided_slice %184 {offsets = [0, 96], sizes = [2, 32], strides = [1, 1]} : vector<2x128xf32> to vector<2x32xf32>
    %189 = arith.mulf %186, %166 : vector<2x32xf32>
    %190 = arith.mulf %185, %187 : vector<2x32xf32>
    %191 = arith.addf %189, %190 : vector<2x32xf32>
    %192 = math.tanh %191 : vector<2x32xf32>
    %193 = arith.mulf %188, %192 : vector<2x32xf32>
    %194 = math.tanh %193 : vector<2x32xf32>
    %195 = arith.index_cast %172 : i32 to index
    %c0_51 = arith.constant 0 : index
    %196 = vector.load %arg12[%195, %c0_51] : memref<16x32xf32, #tpu.memory_space<vmem>>, vector<2x32xf32>
    tpu.vector_store %arg12[%195, %c0_51], %194 {strides = array<i32>} : memref<16x32xf32, #tpu.memory_space<vmem>>, vector<2x32xf32>,
    %c7_i32 = arith.constant 7 : i32
    %c2_i32_52 = arith.constant 2 : i32
    %197 = arith.muli %c7_i32, %c2_i32_52 : i32
    %198 = arith.index_cast %197 : i32 to index
    %c0_53 = arith.constant 0 : index
    %199 = vector.load %arg13[%198, %c0_53] : memref<16x128xf32, #tpu.memory_space<vmem>>, vector<2x128xf32>
    %cst_54 = arith.constant dense<0.000000e+00> : vector<2x128xf32>
    %200 = tpu.matmul %193, %7, %cst_54 {dimension_numbers = #tpu.dot_dimension_numbers<[1], [0], [0], [1], [0, 0, 1, 1], [], []>} : vector<2x32xf32>, vector<32x128xf32>, vector<2x128xf32> -> vector<2x128xf32>
    %201 = arith.addf %199, %200 : vector<2x128xf32>
    %202 = arith.mulf %201, %16 : vector<2x128xf32>
    %203 = arith.negf %202 : vector<2x128xf32>
    %204 = math.exp %203 : vector<2x128xf32>
    %cst_55 = arith.constant 1.000000e+00 : f32
    %205 = vector.broadcast %cst_55 : f32 to vector<2x128xf32>
    %206 = arith.addf %205, %204 : vector<2x128xf32>
    %207 = arith.divf %205, %206 : vector<2x128xf32>
    %208 = arith.mulf %207, %16 : vector<2x128xf32>
    %209 = arith.addf %208, %19 : vector<2x128xf32>
    %210 = vector.extract_strided_slice %209 {offsets = [0, 0], sizes = [2, 32], strides = [1, 1]} : vector<2x128xf32> to vector<2x32xf32>
    %211 = vector.extract_strided_slice %209 {offsets = [0, 32], sizes = [2, 32], strides = [1, 1]} : vector<2x128xf32> to vector<2x32xf32>
    %212 = vector.extract_strided_slice %209 {offsets = [0, 64], sizes = [2, 32], strides = [1, 1]} : vector<2x128xf32> to vector<2x32xf32>
    %213 = vector.extract_strided_slice %209 {offsets = [0, 96], sizes = [2, 32], strides = [1, 1]} : vector<2x128xf32> to vector<2x32xf32>
    %214 = arith.mulf %211, %191 : vector<2x32xf32>
    %215 = arith.mulf %210, %212 : vector<2x32xf32>
    %216 = arith.addf %214, %215 : vector<2x32xf32>
    %217 = math.tanh %216 : vector<2x32xf32>
    %218 = arith.mulf %213, %217 : vector<2x32xf32>
    %219 = math.tanh %218 : vector<2x32xf32>
    %220 = arith.index_cast %197 : i32 to index
    %c0_56 = arith.constant 0 : index
    %221 = vector.load %arg12[%220, %c0_56] : memref<16x32xf32, #tpu.memory_space<vmem>>, vector<2x32xf32>
    tpu.vector_store %arg12[%220, %c0_56], %219 {strides = array<i32>} : memref<16x32xf32, #tpu.memory_space<vmem>>, vector<2x32xf32>,
    %c8_i32 = arith.constant 8 : i32
    %c14 = arith.constant 14 : index
    %c0_57 = arith.constant 0 : index
    %222 = vector.load %arg12[%c14, %c0_57] : memref<16x32xf32, #tpu.memory_space<vmem>>, vector<2x32xf32>
    %c0_58 = arith.constant 0 : index
    %c0_59 = arith.constant 0 : index
    %223 = vector.load %arg7[%c0_58, %c0_59] : memref<32x32xf32, #tpu.memory_space<vmem>>, vector<32x32xf32>
    %cst_60 = arith.constant dense<0.000000e+00> : vector<2x32xf32>
    %224 = tpu.matmul %222, %223, %cst_60 {dimension_numbers = #tpu.dot_dimension_numbers<[1], [0], [0], [1], [0, 0, 1, 1], [], []>} : vector<2x32xf32>, vector<32x32xf32>, vector<2x32xf32> -> vector<2x32xf32>
    %c0_61 = arith.constant 0 : index
    %c0_62 = arith.constant 0 : index
    %225 = vector.load %arg8[%c0_61, %c0_62] : memref<1x32xf32, #tpu.memory_space<vmem>>, vector<1x32xf32>
    %226 = vector.broadcast %225 : vector<1x32xf32> to vector<2x32xf32>
    %227 = arith.addf %224, %226 : vector<2x32xf32>
    %c0_63 = arith.constant 0 : index
    %c0_64 = arith.constant 0 : index
    %228 = vector.load %arg9[%c0_63, %c0_64] : memref<32x8xf32, #tpu.memory_space<vmem>>, vector<32x8xf32>
    %cst_65 = arith.constant dense<0.000000e+00> : vector<2x8xf32>
    %229 = tpu.matmul %227, %228, %cst_65 {dimension_numbers = #tpu.dot_dimension_numbers<[1], [0], [0], [1], [0, 0, 1, 1], [], []>} : vector<2x32xf32>, vector<32x8xf32>, vector<2x8xf32> -> vector<2x8xf32>
    %c0_66 = arith.constant 0 : index
    %c0_67 = arith.constant 0 : index
    %230 = vector.load %arg10[%c0_66, %c0_67] : memref<1x8xf32, #tpu.memory_space<vmem>>, vector<1x8xf32>
    %231 = vector.broadcast %230 : vector<1x8xf32> to vector<2x8xf32>
    %232 = arith.addf %229, %231 : vector<2x8xf32>
    %c0_68 = arith.constant 0 : index
    %c0_69 = arith.constant 0 : index
    %233 = vector.load %arg11[%c0_68, %c0_69] : memref<2x8xf32, #tpu.memory_space<vmem>>, vector<2x8xf32>
    tpu.vector_store %arg11[%c0_68, %c0_69], %232 {strides = array<i32>} : memref<2x8xf32, #tpu.memory_space<vmem>>, vector<2x8xf32>,
    return
  }
  func.func @transform_0(%arg0: i32) -> (i32, i32) {
    %c0_i32 = arith.constant 0 : i32
    %c0_i32_0 = arith.constant 0 : i32
    %c0_i32_1 = arith.constant 0 : i32
    return %c0_i32, %c0_i32_0 : i32, i32
  }
  func.func @transform_1(%arg0: i32) -> (i32, i32) {
    %c0_i32 = arith.constant 0 : i32
    %c0_i32_0 = arith.constant 0 : i32
    %c0_i32_1 = arith.constant 0 : i32
    return %c0_i32, %c0_i32_0 : i32, i32
  }
  func.func @transform_2(%arg0: i32) -> (i32, i32) {
    %c0_i32 = arith.constant 0 : i32
    %c0_i32_0 = arith.constant 0 : i32
    %c0_i32_1 = arith.constant 0 : i32
    return %c0_i32, %c0_i32_0 : i32, i32
  }
  func.func @transform_3(%arg0: i32) -> (i32, i32) {
    %c0_i32 = arith.constant 0 : i32
    %c0_i32_0 = arith.constant 0 : i32
    %c0_i32_1 = arith.constant 0 : i32
    return %c0_i32, %c0_i32_0 : i32, i32
  }
  func.func @transform_4(%arg0: i32) -> (i32, i32) {
    %c0_i32 = arith.constant 0 : i32
    %c0_i32_0 = arith.constant 0 : i32
    %c0_i32_1 = arith.constant 0 : i32
    return %c0_i32, %c0_i32_0 : i32, i32
  }
  func.func @transform_5(%arg0: i32) -> (i32, i32) {
    %c0_i32 = arith.constant 0 : i32
    %c0_i32_0 = arith.constant 0 : i32
    %c0_i32_1 = arith.constant 0 : i32
    return %c0_i32, %c0_i32_0 : i32, i32
  }
  func.func @transform_6(%arg0: i32) -> (i32, i32) {
    %c0_i32 = arith.constant 0 : i32
    %c0_i32_0 = arith.constant 0 : i32
    %c0_i32_1 = arith.constant 0 : i32
    return %c0_i32, %c0_i32_0 : i32, i32
  }
  func.func @transform_7(%arg0: i32) -> (i32, i32) {
    %c0_i32 = arith.constant 0 : i32
    %c0_i32_0 = arith.constant 0 : i32
    %c0_i32_1 = arith.constant 0 : i32
    return %c0_i32, %c0_i32_0 : i32, i32
  }
  func.func @transform_8(%arg0: i32) -> (i32, i32) {
    %c0_i32 = arith.constant 0 : i32
    %c0_i32_0 = arith.constant 0 : i32
    %c0_i32_1 = arith.constant 0 : i32
    return %c0_i32, %c0_i32_0 : i32, i32
  }
  func.func @transform_9(%arg0: i32) -> (i32, i32) {
    %c0_i32 = arith.constant 0 : i32
    %c0_i32_0 = arith.constant 0 : i32
    %c0_i32_1 = arith.constant 0 : i32
    return %c0_i32, %c0_i32_0 : i32, i32
  }
  func.func @transform_10(%arg0: i32) -> (i32, i32) {
    %c0_i32 = arith.constant 0 : i32
    %c0_i32_0 = arith.constant 0 : i32
    %c0_i32_1 = arith.constant 0 : i32
    return %c0_i32, %c0_i32_0 : i32, i32
  }
  func.func @transform_11(%arg0: i32) -> (i32, i32) {
    %c0_i32 = arith.constant 0 : i32
    %c0_i32_0 = arith.constant 0 : i32
    %c0_i32_1 = arith.constant 0 : i32
    return %c0_i32, %c0_i32_0 : i32, i32
  }
}

</mosaic_0001>

<llo_original>
// kernel: tpu_custom_call.1
$region0: #{tpu_custom_call.1}
  #allocation0 [shape = 'u32[]', space=smem, size = 0x4, offset = 0x4, fixed_abs, tag = 'smem constant byte address 0x4 - core index']
  #allocation1 [shape = 'u32[144,128]{1,0:T(1,128)}', space=vmem, size = 0x12000, scoped, tag = 'internal scratch']
  #allocation2 [shape = 'f32[16,128]{1,0:T(8,128)}', space=vmem, size = 0x2000, scoped, tag = 'scratch operand']
  %s0 = inlined_call_operand.vmem [shape: f32[16,16], index: 0, kind: input, shape index: {}]
  %s1 = inlined_call_operand.vmem [shape: f32[2,32], index: 1, kind: input, shape index: {}]
  %s2 = inlined_call_operand.hbm [shape: f32[2,32], index: 2, kind: input, shape index: {}]
  %s3 = inlined_call_operand.hbm [shape: f32[16,128], index: 3, kind: input, shape index: {}]
  %s4 = inlined_call_operand.vmem [shape: f32[32,128], index: 4, kind: input, shape index: {}]
  %s5 = inlined_call_operand.hbm [shape: f32[1,128], index: 5, kind: input, shape index: {}]
  %s6 = inlined_call_operand.hbm [shape: f32[32,32], index: 6, kind: input, shape index: {}]
  %s7 = inlined_call_operand.vmem [shape: f32[1,32], index: 7, kind: input, shape index: {}]
  %s8 = inlined_call_operand.vmem [shape: f32[32,8], index: 8, kind: input, shape index: {}]
  %s9 = inlined_call_operand.vmem [shape: f32[1,8], index: 9, kind: input, shape index: {}]
  %s10 = inlined_call_operand.hbm [shape: f32[2,8], index: 10, kind: output, shape index: {0}]
  %s11 = inlined_call_operand.hbm [shape: f32[16,32], index: 11, kind: output, shape index: {1}]
  %12 = xla_tuple %s10, %s11
  %s13 = sld [smem:[#allocation0]]
  $region74: #{tpu_custom_call.1} parent=0
    _
  %s15 = ssub.s32 1, %s13
  %s16 = scalar_select 0, %s15, %s13
  $region1: #{tpu_custom_call.1} parent=0
    #allocation3 [shape = 'u8[1024]{0}', space=vmem, size = 0x400, scoped, tag = 'input window, operand 2, single buffered']
    #allocation4 [shape = 's32[1]{0}', space=sflag, size = 0x4, scoped, tag = 'scoped memory for tpu_custom_call.1']
    #allocation5 [shape = 's32[1]{0}', space=sflag, size = 0x4, scoped, tag = 'scoped memory for tpu_custom_call.1']
    #allocation6 [shape = 'u8[8192]{0}', space=vmem, size = 0x2000, scoped, tag = 'input window, operand 3, single buffered']
    #allocation7 [shape = 's32[1]{0}', space=sflag, size = 0x4, scoped, tag = 'scoped memory for tpu_custom_call.1']
    #allocation8 [shape = 'u8[512]{0}', space=vmem, size = 0x400, scoped, tag = 'input window, operand 5, single buffered']
    #allocation9 [shape = 'u8[16384]{0}', space=vmem, size = 0x4000, scoped, tag = 'input window, operand 6, single buffered']
    #allocation10 [shape = 's32[1]{0}', space=sflag, size = 0x4, scoped, tag = 'scoped memory for tpu_custom_call.1']
    #allocation11 [shape = 'u8[1024]{0}', space=vmem, size = 0x400, scoped, tag = 'output window, operand 0, single buffered']
    #allocation12 [shape = 'u8[8192]{0}', space=vmem, size = 0x2000, scoped, tag = 'output window, operand 1, single buffered']
    #allocation13 [shape = 's32[1]{0}', space=sflag, size = 0x4, scoped, tag = 'scoped memory for tpu_custom_call.1']
    %17 = vsyncpa [#allocation4], 0
    %18 = vsyncpa [#allocation7], 0
    %19 = vsyncpa [#allocation10], 0
    %20 = vsyncpa [#allocation5], 0
    %21 = vsyncpa [#allocation13], 0
    // Predicated region
    $region2: #{tpu_custom_call.1} parent=1 // pred_check
      _
    $region3: #{tpu_custom_call.1} parent=1 // pred_check_branch
      %23 = sbr.rel (0) target = $region5
    $region4: #{tpu_custom_call.1} parent=1 // pred_region
      _
    $region5: #{tpu_custom_call.1} parent=1 // pred_fallthru
      _
    // Predicated region
    $region6: #{tpu_custom_call.1} parent=1 // pred_check
      _
    $region7: #{tpu_custom_call.1} parent=1 // pred_check_branch
      %25 = sbr.rel (0) target = $region9
    $region8: #{tpu_custom_call.1} parent=1 // pred_region
      _
    $region9: #{tpu_custom_call.1} parent=1 // pred_fallthru
      _
    // Predicated region
    $region10: #{tpu_custom_call.1} parent=1 // pred_check
      _
    $region11: #{tpu_custom_call.1} parent=1 // pred_check_branch
      %27 = sbr.rel (0) target = $region13
    $region12: #{tpu_custom_call.1} parent=1 // pred_region
      %s29 = ssub.s32 32, 32
      %30 = vsyncadd [#allocation4], %s29
      %s32 = sshll.u32 [#allocation3], 4
      %s33 = int_to_ptr.vmem [resolvable:$true] %s32
      %35 = dma.hbm_to_vmem [thread:$0]  %s2, 32, %s33, [#allocation4]
    $region13: #{tpu_custom_call.1} parent=1 // pred_fallthru
      _
    // Predicated region
    $region14: #{tpu_custom_call.1} parent=1 // pred_check
      _
    $region15: #{tpu_custom_call.1} parent=1 // pred_check_branch
      %37 = sbr.rel (0) target = $region17
    $region16: #{tpu_custom_call.1} parent=1 // pred_region
      %s39 = ssub.s32 256, 256
      %40 = vsyncadd [#allocation7], %s39
      %s41 = sshll.u32 [#allocation6], 4
      %s42 = int_to_ptr.vmem [resolvable:$true] %s41
      %47 = dma.hbm_to_vmem [thread:$0]  %s3, 256, %s42, [#allocation7], 128, 128, 8
    $region17: #{tpu_custom_call.1} parent=1 // pred_fallthru
      _
    // Predicated region
    $region18: #{tpu_custom_call.1} parent=1 // pred_check
      _
    $region19: #{tpu_custom_call.1} parent=1 // pred_check_branch
      %49 = sbr.rel (0) target = $region21
    $region20: #{tpu_custom_call.1} parent=1 // pred_region
      _
    $region21: #{tpu_custom_call.1} parent=1 // pred_fallthru
      _
    // Predicated region
    $region22: #{tpu_custom_call.1} parent=1 // pred_check
      _
    $region23: #{tpu_custom_call.1} parent=1 // pred_check_branch
      %51 = sbr.rel (0) target = $region25
    $region24: #{tpu_custom_call.1} parent=1 // pred_region
      %s53 = ssub.s32 16, 16
      %54 = vsyncadd [#allocation7], %s53
      %s56 = sshll.u32 [#allocation8], 4
      %s57 = int_to_ptr.vmem [resolvable:$true] %s56
      %59 = dma.hbm_to_vmem [thread:$0]  %s5, 16, %s57, [#allocation7]
    $region25: #{tpu_custom_call.1} parent=1 // pred_fallthru
      _
    // Predicated region
    $region26: #{tpu_custom_call.1} parent=1 // pred_check
      _
    $region27: #{tpu_custom_call.1} parent=1 // pred_check_branch
      %61 = sbr.rel (0) target = $region29
    $region28: #{tpu_custom_call.1} parent=1 // pred_region
      %s63 = ssub.s32 512, 512
      %64 = vsyncadd [#allocation10], %s63
      %s65 = sshll.u32 [#allocation9], 4
      %s66 = int_to_ptr.vmem [resolvable:$true] %s65
      %71 = dma.hbm_to_vmem [thread:$0]  %s6, 512, %s66, [#allocation10], 128, 128, 8
    $region29: #{tpu_custom_call.1} parent=1 // pred_fallthru
      _
    // Predicated region
    $region30: #{tpu_custom_call.1} parent=1 // pred_check
      _
    $region31: #{tpu_custom_call.1} parent=1 // pred_check_branch
      %73 = sbr.rel (0) target = $region33
    $region32: #{tpu_custom_call.1} parent=1 // pred_region
      _
    $region33: #{tpu_custom_call.1} parent=1 // pred_fallthru
      _
    // Predicated region
    $region34: #{tpu_custom_call.1} parent=1 // pred_check
      _
    $region35: #{tpu_custom_call.1} parent=1 // pred_check_branch
      %75 = sbr.rel (0) target = $region37
    $region36: #{tpu_custom_call.1} parent=1 // pred_region
      _
    $region37: #{tpu_custom_call.1} parent=1 // pred_fallthru
      _
    // Predicated region
    $region38: #{tpu_custom_call.1} parent=1 // pred_check
      _
    $region39: #{tpu_custom_call.1} parent=1 // pred_check_branch
      %77 = sbr.rel (0) target = $region41
    $region40: #{tpu_custom_call.1} parent=1 // pred_region
      _
    $region41: #{tpu_custom_call.1} parent=1 // pred_fallthru
      _
    // Predicated region
    $region42: #{tpu_custom_call.1} parent=1 // pred_check
      _
    $region43: #{tpu_custom_call.1} parent=1 // pred_check_branch
      %79 = sbr.rel (0) target = $region45
    $region44: #{tpu_custom_call.1} parent=1 // pred_region
      %80 = dma.done [#allocation4], 32
    $region45: #{tpu_custom_call.1} parent=1 // pred_fallthru
      _
    // Predicated region
    $region46: #{tpu_custom_call.1} parent=1 // pred_check
      _
    $region47: #{tpu_custom_call.1} parent=1 // pred_check_branch
      %82 = sbr.rel (0) target = $region49
    $region48: #{tpu_custom_call.1} parent=1 // pred_region
      %83 = dma.done [#allocation7], 256
    $region49: #{tpu_custom_call.1} parent=1 // pred_fallthru
      _
    // Predicated region
    $region50: #{tpu_custom_call.1} parent=1 // pred_check
      _
    $region51: #{tpu_custom_call.1} parent=1 // pred_check_branch
      %85 = sbr.rel (0) target = $region53
    $region52: #{tpu_custom_call.1} parent=1 // pred_region
      %86 = dma.done [#allocation7], 16
    $region53: #{tpu_custom_call.1} parent=1 // pred_fallthru
      _
    // Predicated region
    $region54: #{tpu_custom_call.1} parent=1 // pred_check
      _
    $region55: #{tpu_custom_call.1} parent=1 // pred_check_branch
      %88 = sbr.rel (0) target = $region57
    $region56: #{tpu_custom_call.1} parent=1 // pred_region
      %89 = dma.done [#allocation10], 512
    $region57: #{tpu_custom_call.1} parent=1 // pred_fallthru
      _
    %v90 = vld [vmem:[%s0] sm:$0xff]
    %v91 = vld [vmem:[%s0 + $0x8] sm:$0xff]
    %v92 = vld [vmem:[#allocation6] sm:$0xff]
    %v93 = vld [vmem:[#allocation6 + $0x8] sm:$0xff]
    %v94 = vld [vmem:[#allocation8] sm:$0x1]
    %v96 = vlaneseq
    %v97 = vshrl.u32 %v96, 7
    %v98 = vsub.s32 0, %v97
    %v99 = vrot.slane %v94, %v98
    %vm101 = vcmask 130048
    %v103 = vsel %vm101, %v90, 0
    %v106 = vsel %vm101, %v91, 0
    %108 = vmatprep.subr.mxu0 0.0
    %109 = vmatpush1.msra.mxu0 %v92
    %110 = vmatprep.subr.mxu0 0.0
    %111 = vmatpush1.msra.mxu0 %v93
    %112 = vmatprep.subr.mxu0 0.0
    %113 = vmatpush1.msra.mxu0 0.0
    %114 = vmatprep.subr.mxu0 0.0
    %115 = vmatpush1.msra.mxu0 0.0
    %116 = vmatprep.subr.mxu0 0.0
    %117 = vmatpush1.msra.mxu0 0.0
    %118 = vmatprep.subr.mxu0 0.0
    %119 = vmatpush1.msra.mxu0 0.0
    %120 = vmatprep.subr.mxu0 0.0
    %121 = vmatpush1.msra.mxu0 0.0
    %122 = vmatprep.subr.mxu0 0.0
    %123 = vmatpush1.msra.mxu0 0.0
    %124 = vmatprep.subr.mxu0 0.0
    %125 = vmatpush1.msra.mxu0 0.0
    %126 = vmatprep.subr.mxu0 0.0
    %127 = vmatpush1.msra.mxu0 0.0
    %128 = vmatprep.subr.mxu0 0.0
    %129 = vmatpush1.msra.mxu0 0.0
    %130 = vmatprep.subr.mxu0 0.0
    %131 = vmatpush1.msra.mxu0 0.0
    %132 = vmatprep.subr.mxu0 0.0
    %133 = vmatpush1.msra.mxu0 0.0
    %134 = vmatprep.subr.mxu0 0.0
    %135 = vmatpush1.msra.mxu0 0.0
    %136 = vmatprep.subr.mxu0 0.0
    %137 = vmatpush1.msra.mxu0 0.0
    %138 = vmatprep.subr.mxu0 0.0
    %139 = vmatpush1.msra.mxu0 0.0
    %140 = vmatprep.subr.mxu0 0.0
    %141 = vmatpush1.msra.mxu0 0.0
    %142 = vmatprep.subr.mxu0 0.0
    %143 = vmatpush1.msra.mxu0 0.0
    %144 = vmatprep.subr.mxu0 0.0
    %145 = vmatpush1.msra.mxu0 0.0
    %146 = vmatprep.subr.mxu0 0.0
    %147 = vmatpush1.msra.mxu0 0.0
    %148 = vmatprep.subr.mxu0 0.0
    %149 = vmatpush1.msra.mxu0 0.0
    %150 = vmatprep.subr.mxu0 0.0
    %151 = vmatpush1.msra.mxu0 0.0
    %152 = vmatprep.subr.mxu0 0.0
    %153 = vmatpush1.msra.mxu0 0.0
    %154 = vmatprep.subr.mxu0 0.0
    %155 = vmatpush1.msra.mxu0 0.0
    %156 = vmatprep.subr.mxu0 0.0
    %157 = vmatpush1.msra.mxu0 0.0
    %158 = vmatprep.subr.mxu0 0.0
    %159 = vmatpush1.msra.mxu0 0.0
    %160 = vmatprep.subr.mxu0 0.0
    %161 = vmatpush1.msra.mxu0 0.0
    %162 = vmatprep.subr.mxu0 0.0
    %163 = vmatpush1.msra.mxu0 0.0
    %164 = vmatprep.subr.mxu0 0.0
    %165 = vmatpush1.msra.mxu0 0.0
    %166 = vmatprep.subr.mxu0 0.0
    %167 = vmatpush1.msra.mxu0 0.0
    %168 = vmatprep.subr.mxu0 0.0
    %169 = vmatpush1.msra.mxu0 0.0
    %170 = vmatprep.subr.mxu0 0.0
    %171 = vmatpush1.msra.mxu0 0.0
    %172 = vmatprep.mubr.f32.mxu0 0.0
    %173 = vmatmul.mubr.f32.gmra.mrb[0].mxu0 %v103
    %v174 = vpop.f32.mrb[0].mxu0
    %v175 = vadd.f32 %v99, %v174
    %v176 = vpop.f32.mrb[0].mxu0
    %177 = vmatprep.mubr.f32.mxu0 0.0
    %178 = vmatmul.mubr.f32.gmra.mrb[0].mxu0 %v106
    %v179 = vpop.f32.mrb[0].mxu0
    %v180 = vadd.f32 %v99, %v179
    %v181 = vpop.f32.mrb[0].mxu0
    %182 = vdwg.mxu0
    %183 = vst [vmem:[#allocation2] sm:$0xff] %v175
    %184 = vst [vmem:[#allocation2 + $0x8] sm:$0xff] %v180
    %v185 = vld [vmem:[%s4] sm:$0xff]
    %v186 = vld [vmem:[%s4 + $0x8] sm:$0xff]
    %v187 = vld [vmem:[%s4 + $0x10] sm:$0xff]
    %v188 = vld [vmem:[%s4 + $0x18] sm:$0xff]
    %v189 = vlaneseq
    %v190 = vand.u32 %v189, 127
    %vm191 = vcmp.ge.s32.totalorder %v190, 64
    %vm192 = vcmp.lt.s32.totalorder %v190, 96
    %vm193 = vmand %vm191, %vm192
    %v194 = vsel %vm193, 2.0, 1.0
    %v195 = vsel %vm193, -1.0, 0.0
    %v196 = vld [vmem:[%s1] sm:$0x3]
    %v197 = vld [vmem:[#allocation3] sm:$0x3]
    %v198 = vld [vmem:[#allocation2] sm:$0x3]
    %vm199 = vcmask 261120
    %v201 = vsel %vm199, %v196, 0
    %203 = vmatprep.subr.mxu0 0.0
    %204 = vmatpush1.msra.mxu0 %v185
    %205 = vmatprep.subr.mxu0 0.0
    %206 = vmatpush1.msra.mxu0 %v186
    %207 = vmatprep.subr.mxu0 0.0
    %208 = vmatpush1.msra.mxu0 %v187
    %209 = vmatprep.subr.mxu0 0.0
    %210 = vmatpush1.msra.mxu0 %v188
    %211 = vmatprep.subr.mxu0 0.0
    %212 = vmatpush1.msra.mxu0 0.0
    %213 = vmatprep.subr.mxu0 0.0
    %214 = vmatpush1.msra.mxu0 0.0
    %215 = vmatprep.subr.mxu0 0.0
    %216 = vmatpush1.msra.mxu0 0.0
    %217 = vmatprep.subr.mxu0 0.0
    %218 = vmatpush1.msra.mxu0 0.0
    %219 = vmatprep.subr.mxu0 0.0
    %220 = vmatpush1.msra.mxu0 0.0
    %221 = vmatprep.subr.mxu0 0.0
    %222 = vmatpush1.msra.mxu0 0.0
    %223 = vmatprep.subr.mxu0 0.0
    %224 = vmatpush1.msra.mxu0 0.0
    %225 = vmatprep.subr.mxu0 0.0
    %226 = vmatpush1.msra.mxu0 0.0
    %227 = vmatprep.subr.mxu0 0.0
    %228 = vmatpush1.msra.mxu0 0.0
    %229 = vmatprep.subr.mxu0 0.0
    %230 = vmatpush1.msra.mxu0 0.0
    %231 = vmatprep.subr.mxu0 0.0
    %232 = vmatpush1.msra.mxu0 0.0
    %233 = vmatprep.subr.mxu0 0.0
    %234 = vmatpush1.msra.mxu0 0.0
    %235 = vmatprep.subr.mxu0 0.0
    %236 = vmatpush1.msra.mxu0 0.0
    %237 = vmatprep.subr.mxu0 0.0
    %238 = vmatpush1.msra.mxu0 0.0
    %239 = vmatprep.subr.mxu0 0.0
    %240 = vmatpush1.msra.mxu0 0.0
    %241 = vmatprep.subr.mxu0 0.0
    %242 = vmatpush1.msra.mxu0 0.0
    %243 = vmatprep.subr.mxu0 0.0
    %244 = vmatpush1.msra.mxu0 0.0
    %245 = vmatprep.subr.mxu0 0.0
    %246 = vmatpush1.msra.mxu0 0.0
    %247 = vmatprep.subr.mxu0 0.0
    %248 = vmatpush1.msra.mxu0 0.0
    %249 = vmatprep.subr.mxu0 0.0
    %250 = vmatpush1.msra.mxu0 0.0
    %251 = vmatprep.subr.mxu0 0.0
    %252 = vmatpush1.msra.mxu0 0.0
    %253 = vmatprep.subr.mxu0 0.0
    %254 = vmatpush1.msra.mxu0 0.0
    %255 = vmatprep.subr.mxu0 0.0
    %256 = vmatpush1.msra.mxu0 0.0
    %257 = vmatprep.subr.mxu0 0.0
    %258 = vmatpush1.msra.mxu0 0.0
    %259 = vmatprep.subr.mxu0 0.0
    %260 = vmatpush1.msra.mxu0 0.0
    %261 = vmatprep.subr.mxu0 0.0
    %262 = vmatpush1.msra.mxu0 0.0
    %263 = vmatprep.subr.mxu0 0.0
    %264 = vmatpush1.msra.mxu0 0.0
    %265 = vmatprep.subr.mxu0 0.0
    %266 = vmatpush1.msra.mxu0 0.0
    %267 = vmatprep.mubr.f32.mxu0 0.0
    %268 = vmatmul.mubr.f32.gmra.mrb[0].mxu0 %v201
    %v269 = vpop.f32.mrb[0].mxu0
    %v270 = vadd.f32 0.0, %v269
    %v271 = vpop.f32.mrb[0].mxu0
    %272 = vdwg.mxu0
    %v273 = vadd.f32 %v198, %v270
    %v274 = vmul.f32 %v273, %v194
    %v275 = vxor.u32 %v274, 2147483648
    %v276 = vmul.f32 %v275, 1.442695
    %v277 = vpow.pop %v276
    %v278 = vadd.f32 %v277, 1.0
    %v279 = vrcp.pop %v278
    %v280 = vmul.f32 1.0, %v279
    %v281 = vmul.f32 %v280, %v194
    %v282 = vadd.f32 %v281, %v195
    %284 = vrot.lane.b32.xlu0 %v197, 32
    %v285 = vpop.permute.xlu0 %284
    %v287 = vmul.f32 %v282, %v285
    %289 = vrot.lane.b32.xlu0 %v282, 64
    %v290 = vpop.permute.xlu0 %289
    %v292 = vmul.f32 %v282, %v290
    %294 = vrot.lane.b32.xlu0 %v292, 32
    %v295 = vpop.permute.xlu0 %294
    %v297 = vadd.f32 %v287, %v295
    %v298 = vtanh.pop %v297
    %300 = vrot.lane.b32.xlu0 %v298, 64
    %v301 = vpop.permute.xlu0 %300
    %v303 = vmul.f32 %v282, %v301
    %v304 = vtanh.pop %v303
    %306 = vrot.lane.b32.xlu0 %v304, 32
    %v307 = vpop.permute.xlu0 %306
    %vm309 = vcmask 254976
    %310 = vst.msk [vmem:[#allocation12] sm:$0x3] %vm309, %v307
    %v311 = vld [vmem:[#allocation2 + $0x2] sm:$0x3]
    %313 = vrot.lane.b32.xlu0 %v303, 32
    %v314 = vpop.permute.xlu0 %313
    %v315 = vsel %vm199, %v314, 0
    %317 = vmatprep.subr.mxu0 0.0
    %318 = vmatpush1.msra.mxu0 %v185
    %319 = vmatprep.subr.mxu0 0.0
    %320 = vmatpush1.msra.mxu0 %v186
    %321 = vmatprep.subr.mxu0 0.0
    %322 = vmatpush1.msra.mxu0 %v187
    %323 = vmatprep.subr.mxu0 0.0
    %324 = vmatpush1.msra.mxu0 %v188
    %325 = vmatprep.subr.mxu0 0.0
    %326 = vmatpush1.msra.mxu0 0.0
    %327 = vmatprep.subr.mxu0 0.0
    %328 = vmatpush1.msra.mxu0 0.0
    %329 = vmatprep.subr.mxu0 0.0
    %330 = vmatpush1.msra.mxu0 0.0
    %331 = vmatprep.subr.mxu0 0.0
    %332 = vmatpush1.msra.mxu0 0.0
    %333 = vmatprep.subr.mxu0 0.0
    %334 = vmatpush1.msra.mxu0 0.0
    %335 = vmatprep.subr.mxu0 0.0
    %336 = vmatpush1.msra.mxu0 0.0
    %337 = vmatprep.subr.mxu0 0.0
    %338 = vmatpush1.msra.mxu0 0.0
    %339 = vmatprep.subr.mxu0 0.0
    %340 = vmatpush1.msra.mxu0 0.0
    %341 = vmatprep.subr.mxu0 0.0
    %342 = vmatpush1.msra.mxu0 0.0
    %343 = vmatprep.subr.mxu0 0.0
    %344 = vmatpush1.msra.mxu0 0.0
    %345 = vmatprep.subr.mxu0 0.0
    %346 = vmatpush1.msra.mxu0 0.0
    %347 = vmatprep.subr.mxu0 0.0
    %348 = vmatpush1.msra.mxu0 0.0
    %349 = vmatprep.subr.mxu0 0.0
    %350 = vmatpush1.msra.mxu0 0.0
    %351 = vmatprep.subr.mxu0 0.0
    %352 = vmatpush1.msra.mxu0 0.0
    %353 = vmatprep.subr.mxu0 0.0
    %354 = vmatpush1.msra.mxu0 0.0
    %355 = vmatprep.subr.mxu0 0.0
    %356 = vmatpush1.msra.mxu0 0.0
    %357 = vmatprep.subr.mxu0 0.0
    %358 = vmatpush1.msra.mxu0 0.0
    %359 = vmatprep.subr.mxu0 0.0
    %360 = vmatpush1.msra.mxu0 0.0
    %361 = vmatprep.subr.mxu0 0.0
    %362 = vmatpush1.msra.mxu0 0.0
    %363 = vmatprep.subr.mxu0 0.0
    %364 = vmatpush1.msra.mxu0 0.0
    %365 = vmatprep.subr.mxu0 0.0
    %366 = vmatpush1.msra.mxu0 0.0
    %367 = vmatprep.subr.mxu0 0.0
    %368 = vmatpush1.msra.mxu0 0.0
    %369 = vmatprep.subr.mxu0 0.0
    %370 = vmatpush1.msra.mxu0 0.0
    %371 = vmatprep.subr.mxu0 0.0
    %372 = vmatpush1.msra.mxu0 0.0
    %373 = vmatprep.subr.mxu0 0.0
    %374 = vmatpush1.msra.mxu0 0.0
    %375 = vmatprep.subr.mxu0 0.0
    %376 = vmatpush1.msra.mxu0 0.0
    %377 = vmatprep.subr.mxu0 0.0
    %378 = vmatpush1.msra.mxu0 0.0
    %379 = vmatprep.subr.mxu0 0.0
    %380 = vmatpush1.msra.mxu0 0.0
    %381 = vmatprep.mubr.f32.mxu0 0.0
    %382 = vmatmul.mubr.f32.gmra.mrb[0].mxu0 %v315
    %v383 = vpop.f32.mrb[0].mxu0
    %v384 = vadd.f32 0.0, %v383
    %v385 = vpop.f32.mrb[0].mxu0
    %386 = vdwg.mxu0
    %v387 = vadd.f32 %v311, %v384
    %v388 = vmul.f32 %v387, %v194
    %v389 = vxor.u32 %v388, 2147483648
    %v390 = vmul.f32 %v389, 1.442695
    %v391 = vpow.pop %v390
    %v392 = vadd.f32 %v391, 1.0
    %v393 = vrcp.pop %v392
    %v394 = vmul.f32 1.0, %v393
    %v395 = vmul.f32 %v394, %v194
    %v396 = vadd.f32 %v395, %v195
    %v397 = vmul.f32 %v396, %v297
    %399 = vrot.lane.b32.xlu0 %v396, 64
    %v400 = vpop.permute.xlu0 %399
    %v402 = vmul.f32 %v396, %v400
    %404 = vrot.lane.b32.xlu0 %v402, 32
    %v405 = vpop.permute.xlu0 %404
    %v407 = vadd.f32 %v397, %v405
    %v408 = vtanh.pop %v407
    %410 = vrot.lane.b32.xlu0 %v408, 64
    %v411 = vpop.permute.xlu0 %410
    %v413 = vmul.f32 %v396, %v411
    %v414 = vtanh.pop %v413
    %416 = vrot.lane.b32.xlu0 %v414, 32
    %v417 = vpop.permute.xlu0 %416
    %419 = vst.msk [vmem:[#allocation12 + $0x2] sm:$0x3] %vm309, %v417
    %v420 = vld [vmem:[#allocation2 + $0x4] sm:$0x3]
    %422 = vrot.lane.b32.xlu0 %v413, 32
    %v423 = vpop.permute.xlu0 %422
    %v424 = vsel %vm199, %v423, 0
    %426 = vmatprep.subr.mxu0 0.0
    %427 = vmatpush1.msra.mxu0 %v185
    %428 = vmatprep.subr.mxu0 0.0
    %429 = vmatpush1.msra.mxu0 %v186
    %430 = vmatprep.subr.mxu0 0.0
    %431 = vmatpush1.msra.mxu0 %v187
    %432 = vmatprep.subr.mxu0 0.0
    %433 = vmatpush1.msra.mxu0 %v188
    %434 = vmatprep.subr.mxu0 0.0
    %435 = vmatpush1.msra.mxu0 0.0
    %436 = vmatprep.subr.mxu0 0.0
    %437 = vmatpush1.msra.mxu0 0.0
    %438 = vmatprep.subr.mxu0 0.0
    %439 = vmatpush1.msra.mxu0 0.0
    %440 = vmatprep.subr.mxu0 0.0
    %441 = vmatpush1.msra.mxu0 0.0
    %442 = vmatprep.subr.mxu0 0.0
    %443 = vmatpush1.msra.mxu0 0.0
    %444 = vmatprep.subr.mxu0 0.0
    %445 = vmatpush1.msra.mxu0 0.0
    %446 = vmatprep.subr.mxu0 0.0
    %447 = vmatpush1.msra.mxu0 0.0
    %448 = vmatprep.subr.mxu0 0.0
    %449 = vmatpush1.msra.mxu0 0.0
    %450 = vmatprep.subr.mxu0 0.0
    %451 = vmatpush1.msra.mxu0 0.0
    %452 = vmatprep.subr.mxu0 0.0
    %453 = vmatpush1.msra.mxu0 0.0
    %454 = vmatprep.subr.mxu0 0.0
    %455 = vmatpush1.msra.mxu0 0.0
    %456 = vmatprep.subr.mxu0 0.0
    %457 = vmatpush1.msra.mxu0 0.0
    %458 = vmatprep.subr.mxu0 0.0
    %459 = vmatpush1.msra.mxu0 0.0
    %460 = vmatprep.subr.mxu0 0.0
    %461 = vmatpush1.msra.mxu0 0.0
    %462 = vmatprep.subr.mxu0 0.0
    %463 = vmatpush1.msra.mxu0 0.0
    %464 = vmatprep.subr.mxu0 0.0
    %465 = vmatpush1.msra.mxu0 0.0
    %466 = vmatprep.subr.mxu0 0.0
    %467 = vmatpush1.msra.mxu0 0.0
    %468 = vmatprep.subr.mxu0 0.0
    %469 = vmatpush1.msra.mxu0 0.0
    %470 = vmatprep.subr.mxu0 0.0
    %471 = vmatpush1.msra.mxu0 0.0
    %472 = vmatprep.subr.mxu0 0.0
    %473 = vmatpush1.msra.mxu0 0.0
    %474 = vmatprep.subr.mxu0 0.0
    %475 = vmatpush1.msra.mxu0 0.0
    %476 = vmatprep.subr.mxu0 0.0
    %477 = vmatpush1.msra.mxu0 0.0
    %478 = vmatprep.subr.mxu0 0.0
    %479 = vmatpush1.msra.mxu0 0.0
    %480 = vmatprep.subr.mxu0 0.0
    %481 = vmatpush1.msra.mxu0 0.0
    %482 = vmatprep.subr.mxu0 0.0
    %483 = vmatpush1.msra.mxu0 0.0
    %484 = vmatprep.subr.mxu0 0.0
    %485 = vmatpush1.msra.mxu0 0.0
    %486 = vmatprep.subr.mxu0 0.0
    %487 = vmatpush1.msra.mxu0 0.0
    %488 = vmatprep.subr.mxu0 0.0
    %489 = vmatpush1.msra.mxu0 0.0
    %490 = vmatprep.mubr.f32.mxu0 0.0
    %491 = vmatmul.mubr.f32.gmra.mrb[0].mxu0 %v424
    %v492 = vpop.f32.mrb[0].mxu0
    %v493 = vadd.f32 0.0, %v492
    %v494 = vpop.f32.mrb[0].mxu0
    %495 = vdwg.mxu0
    %v496 = vadd.f32 %v420, %v493
    %v497 = vmul.f32 %v496, %v194
    %v498 = vxor.u32 %v497, 2147483648
    %v499 = vmul.f32 %v498, 1.442695
    %v500 = vpow.pop %v499
    %v501 = vadd.f32 %v500, 1.0
    %v502 = vrcp.pop %v501
    %v503 = vmul.f32 1.0, %v502
    %v504 = vmul.f32 %v503, %v194
    %v505 = vadd.f32 %v504, %v195
    %v506 = vmul.f32 %v505, %v407
    %508 = vrot.lane.b32.xlu0 %v505, 64
    %v509 = vpop.permute.xlu0 %508
    %v511 = vmul.f32 %v505, %v509
    %513 = vrot.lane.b32.xlu0 %v511, 32
    %v514 = vpop.permute.xlu0 %513
    %v516 = vadd.f32 %v506, %v514
    %v517 = vtanh.pop %v516
    %519 = vrot.lane.b32.xlu0 %v517, 64
    %v520 = vpop.permute.xlu0 %519
    %v522 = vmul.f32 %v505, %v520
    %v523 = vtanh.pop %v522
    %525 = vrot.lane.b32.xlu0 %v523, 32
    %v526 = vpop.permute.xlu0 %525
    %528 = vst.msk [vmem:[#allocation12 + $0x4] sm:$0x3] %vm309, %v526
    %v529 = vld [vmem:[#allocation2 + $0x6] sm:$0x3]
    %531 = vrot.lane.b32.xlu0 %v522, 32
    %v532 = vpop.permute.xlu0 %531
    %v533 = vsel %vm199, %v532, 0
    %535 = vmatprep.subr.mxu0 0.0
    %536 = vmatpush1.msra.mxu0 %v185
    %537 = vmatprep.subr.mxu0 0.0
    %538 = vmatpush1.msra.mxu0 %v186
    %539 = vmatprep.subr.mxu0 0.0
    %540 = vmatpush1.msra.mxu0 %v187
    %541 = vmatprep.subr.mxu0 0.0
    %542 = vmatpush1.msra.mxu0 %v188
    %543 = vmatprep.subr.mxu0 0.0
    %544 = vmatpush1.msra.mxu0 0.0
    %545 = vmatprep.subr.mxu0 0.0
    %546 = vmatpush1.msra.mxu0 0.0
    %547 = vmatprep.subr.mxu0 0.0
    %548 = vmatpush1.msra.mxu0 0.0
    %549 = vmatprep.subr.mxu0 0.0
    %550 = vmatpush1.msra.mxu0 0.0
    %551 = vmatprep.subr.mxu0 0.0
    %552 = vmatpush1.msra.mxu0 0.0
    %553 = vmatprep.subr.mxu0 0.0
    %554 = vmatpush1.msra.mxu0 0.0
    %555 = vmatprep.subr.mxu0 0.0
    %556 = vmatpush1.msra.mxu0 0.0
    %557 = vmatprep.subr.mxu0 0.0
    %558 = vmatpush1.msra.mxu0 0.0
    %559 = vmatprep.subr.mxu0 0.0
    %560 = vmatpush1.msra.mxu0 0.0
    %561 = vmatprep.subr.mxu0 0.0
    %562 = vmatpush1.msra.mxu0 0.0
    %563 = vmatprep.subr.mxu0 0.0
    %564 = vmatpush1.msra.mxu0 0.0
    %565 = vmatprep.subr.mxu0 0.0
    %566 = vmatpush1.msra.mxu0 0.0
    %567 = vmatprep.subr.mxu0 0.0
    %568 = vmatpush1.msra.mxu0 0.0
    %569 = vmatprep.subr.mxu0 0.0
    %570 = vmatpush1.msra.mxu0 0.0
    %571 = vmatprep.subr.mxu0 0.0
    %572 = vmatpush1.msra.mxu0 0.0
    %573 = vmatprep.subr.mxu0 0.0
    %574 = vmatpush1.msra.mxu0 0.0
    %575 = vmatprep.subr.mxu0 0.0
    %576 = vmatpush1.msra.mxu0 0.0
    %577 = vmatprep.subr.mxu0 0.0
    %578 = vmatpush1.msra.mxu0 0.0
    %579 = vmatprep.subr.mxu0 0.0
    %580 = vmatpush1.msra.mxu0 0.0
    %581 = vmatprep.subr.mxu0 0.0
    %582 = vmatpush1.msra.mxu0 0.0
    %583 = vmatprep.subr.mxu0 0.0
    %584 = vmatpush1.msra.mxu0 0.0
    %585 = vmatprep.subr.mxu0 0.0
    %586 = vmatpush1.msra.mxu0 0.0
    %587 = vmatprep.subr.mxu0 0.0
    %588 = vmatpush1.msra.mxu0 0.0
    %589 = vmatprep.subr.mxu0 0.0
    %590 = vmatpush1.msra.mxu0 0.0
    %591 = vmatprep.subr.mxu0 0.0
    %592 = vmatpush1.msra.mxu0 0.0
    %593 = vmatprep.subr.mxu0 0.0
    %594 = vmatpush1.msra.mxu0 0.0
    %595 = vmatprep.subr.mxu0 0.0
    %596 = vmatpush1.msra.mxu0 0.0
    %597 = vmatprep.subr.mxu0 0.0
    %598 = vmatpush1.msra.mxu0 0.0
    %599 = vmatprep.mubr.f32.mxu0 0.0
    %600 = vmatmul.mubr.f32.gmra.mrb[0].mxu0 %v533
    %v601 = vpop.f32.mrb[0].mxu0
    %v602 = vadd.f32 0.0, %v601
    %v603 = vpop.f32.mrb[0].mxu0
    %604 = vdwg.mxu0
    %v605 = vadd.f32 %v529, %v602
    %v606 = vmul.f32 %v605, %v194
    %v607 = vxor.u32 %v606, 2147483648
    %v608 = vmul.f32 %v607, 1.442695
    %v609 = vpow.pop %v608
    %v610 = vadd.f32 %v609, 1.0
    %v611 = vrcp.pop %v610
    %v612 = vmul.f32 1.0, %v611
    %v613 = vmul.f32 %v612, %v194
    %v614 = vadd.f32 %v613, %v195
    %v615 = vmul.f32 %v614, %v516
    %617 = vrot.lane.b32.xlu0 %v614, 64
    %v618 = vpop.permute.xlu0 %617
    %v620 = vmul.f32 %v614, %v618
    %622 = vrot.lane.b32.xlu0 %v620, 32
    %v623 = vpop.permute.xlu0 %622
    %v625 = vadd.f32 %v615, %v623
    %v626 = vtanh.pop %v625
    %628 = vrot.lane.b32.xlu0 %v626, 64
    %v629 = vpop.permute.xlu0 %628
    %v631 = vmul.f32 %v614, %v629
    %v632 = vtanh.pop %v631
    %634 = vrot.lane.b32.xlu0 %v632, 32
    %v635 = vpop.permute.xlu0 %634
    %637 = vst.msk [vmem:[#allocation12 + $0x6] sm:$0x3] %vm309, %v635
    %v638 = vld [vmem:[#allocation2 + $0x8] sm:$0x3]
    %640 = vrot.lane.b32.xlu0 %v631, 32
    %v641 = vpop.permute.xlu0 %640
    %v642 = vsel %vm199, %v641, 0
    %644 = vmatprep.subr.mxu0 0.0
    %645 = vmatpush1.msra.mxu0 %v185
    %646 = vmatprep.subr.mxu0 0.0
    %647 = vmatpush1.msra.mxu0 %v186
    %648 = vmatprep.subr.mxu0 0.0
    %649 = vmatpush1.msra.mxu0 %v187
    %650 = vmatprep.subr.mxu0 0.0
    %651 = vmatpush1.msra.mxu0 %v188
    %652 = vmatprep.subr.mxu0 0.0
    %653 = vmatpush1.msra.mxu0 0.0
    %654 = vmatprep.subr.mxu0 0.0
    %655 = vmatpush1.msra.mxu0 0.0
    %656 = vmatprep.subr.mxu0 0.0
    %657 = vmatpush1.msra.mxu0 0.0
    %658 = vmatprep.subr.mxu0 0.0
    %659 = vmatpush1.msra.mxu0 0.0
    %660 = vmatprep.subr.mxu0 0.0
    %661 = vmatpush1.msra.mxu0 0.0
    %662 = vmatprep.subr.mxu0 0.0
    %663 = vmatpush1.msra.mxu0 0.0
    %664 = vmatprep.subr.mxu0 0.0
    %665 = vmatpush1.msra.mxu0 0.0
    %666 = vmatprep.subr.mxu0 0.0
    %667 = vmatpush1.msra.mxu0 0.0
    %668 = vmatprep.subr.mxu0 0.0
    %669 = vmatpush1.msra.mxu0 0.0
    %670 = vmatprep.subr.mxu0 0.0
    %671 = vmatpush1.msra.mxu0 0.0
    %672 = vmatprep.subr.mxu0 0.0
    %673 = vmatpush1.msra.mxu0 0.0
    %674 = vmatprep.subr.mxu0 0.0
    %675 = vmatpush1.msra.mxu0 0.0
    %676 = vmatprep.subr.mxu0 0.0
    %677 = vmatpush1.msra.mxu0 0.0
    %678 = vmatprep.subr.mxu0 0.0
    %679 = vmatpush1.msra.mxu0 0.0
    %680 = vmatprep.subr.mxu0 0.0
    %681 = vmatpush1.msra.mxu0 0.0
    %682 = vmatprep.subr.mxu0 0.0
    %683 = vmatpush1.msra.mxu0 0.0
    %684 = vmatprep.subr.mxu0 0.0
    %685 = vmatpush1.msra.mxu0 0.0
    %686 = vmatprep.subr.mxu0 0.0
    %687 = vmatpush1.msra.mxu0 0.0
    %688 = vmatprep.subr.mxu0 0.0
    %689 = vmatpush1.msra.mxu0 0.0
    %690 = vmatprep.subr.mxu0 0.0
    %691 = vmatpush1.msra.mxu0 0.0
    %692 = vmatprep.subr.mxu0 0.0
    %693 = vmatpush1.msra.mxu0 0.0
    %694 = vmatprep.subr.mxu0 0.0
    %695 = vmatpush1.msra.mxu0 0.0
    %696 = vmatprep.subr.mxu0 0.0
    %697 = vmatpush1.msra.mxu0 0.0
    %698 = vmatprep.subr.mxu0 0.0
    %699 = vmatpush1.msra.mxu0 0.0
    %700 = vmatprep.subr.mxu0 0.0
    %701 = vmatpush1.msra.mxu0 0.0
    %702 = vmatprep.subr.mxu0 0.0
    %703 = vmatpush1.msra.mxu0 0.0
    %704 = vmatprep.subr.mxu0 0.0
    %705 = vmatpush1.msra.mxu0 0.0
    %706 = vmatprep.subr.mxu0 0.0
    %707 = vmatpush1.msra.mxu0 0.0
    %708 = vmatprep.mubr.f32.mxu0 0.0
    %709 = vmatmul.mubr.f32.gmra.mrb[0].mxu0 %v642
    %v710 = vpop.f32.mrb[0].mxu0
    %v711 = vadd.f32 0.0, %v710
    %v712 = vpop.f32.mrb[0].mxu0
    %713 = vdwg.mxu0
    %v714 = vadd.f32 %v638, %v711
    %v715 = vmul.f32 %v714, %v194
    %v716 = vxor.u32 %v715, 2147483648
    %v717 = vmul.f32 %v716, 1.442695
    %v718 = vpow.pop %v717
    %v719 = vadd.f32 %v718, 1.0
    %v720 = vrcp.pop %v719
    %v721 = vmul.f32 1.0, %v720
    %v722 = vmul.f32 %v721, %v194
    %v723 = vadd.f32 %v722, %v195
    %v724 = vmul.f32 %v723, %v625
    %726 = vrot.lane.b32.xlu0 %v723, 64
    %v727 = vpop.permute.xlu0 %726
    %v729 = vmul.f32 %v723, %v727
    %731 = vrot.lane.b32.xlu0 %v729, 32
    %v732 = vpop.permute.xlu0 %731
    %v734 = vadd.f32 %v724, %v732
    %v735 = vtanh.pop %v734
    %737 = vrot.lane.b32.xlu0 %v735, 64
    %v738 = vpop.permute.xlu0 %737
    %v740 = vmul.f32 %v723, %v738
    %v741 = vtanh.pop %v740
    %743 = vrot.lane.b32.xlu0 %v741, 32
    %v744 = vpop.permute.xlu0 %743
    %746 = vst.msk [vmem:[#allocation12 + $0x8] sm:$0x3] %vm309, %v744
    %v747 = vld [vmem:[#allocation2 + $0xa] sm:$0x3]
    %749 = vrot.lane.b32.xlu0 %v740, 32
    %v750 = vpop.permute.xlu0 %749
    %v751 = vsel %vm199, %v750, 0
    %753 = vmatprep.subr.mxu0 0.0
    %754 = vmatpush1.msra.mxu0 %v185
    %755 = vmatprep.subr.mxu0 0.0
    %756 = vmatpush1.msra.mxu0 %v186
    %757 = vmatprep.subr.mxu0 0.0
    %758 = vmatpush1.msra.mxu0 %v187
    %759 = vmatprep.subr.mxu0 0.0
    %760 = vmatpush1.msra.mxu0 %v188
    %761 = vmatprep.subr.mxu0 0.0
    %762 = vmatpush1.msra.mxu0 0.0
    %763 = vmatprep.subr.mxu0 0.0
    %764 = vmatpush1.msra.mxu0 0.0
    %765 = vmatprep.subr.mxu0 0.0
    %766 = vmatpush1.msra.mxu0 0.0
    %767 = vmatprep.subr.mxu0 0.0
    %768 = vmatpush1.msra.mxu0 0.0
    %769 = vmatprep.subr.mxu0 0.0
    %770 = vmatpush1.msra.mxu0 0.0
    %771 = vmatprep.subr.mxu0 0.0
    %772 = vmatpush1.msra.mxu0 0.0
    %773 = vmatprep.subr.mxu0 0.0
    %774 = vmatpush1.msra.mxu0 0.0
    %775 = vmatprep.subr.mxu0 0.0
    %776 = vmatpush1.msra.mxu0 0.0
    %777 = vmatprep.subr.mxu0 0.0
    %778 = vmatpush1.msra.mxu0 0.0
    %779 = vmatprep.subr.mxu0 0.0
    %780 = vmatpush1.msra.mxu0 0.0
    %781 = vmatprep.subr.mxu0 0.0
    %782 = vmatpush1.msra.mxu0 0.0
    %783 = vmatprep.subr.mxu0 0.0
    %784 = vmatpush1.msra.mxu0 0.0
    %785 = vmatprep.subr.mxu0 0.0
    %786 = vmatpush1.msra.mxu0 0.0
    %787 = vmatprep.subr.mxu0 0.0
    %788 = vmatpush1.msra.mxu0 0.0
    %789 = vmatprep.subr.mxu0 0.0
    %790 = vmatpush1.msra.mxu0 0.0
    %791 = vmatprep.subr.mxu0 0.0
    %792 = vmatpush1.msra.mxu0 0.0
    %793 = vmatprep.subr.mxu0 0.0
    %794 = vmatpush1.msra.mxu0 0.0
    %795 = vmatprep.subr.mxu0 0.0
    %796 = vmatpush1.msra.mxu0 0.0
    %797 = vmatprep.subr.mxu0 0.0
    %798 = vmatpush1.msra.mxu0 0.0
    %799 = vmatprep.subr.mxu0 0.0
    %800 = vmatpush1.msra.mxu0 0.0
    %801 = vmatprep.subr.mxu0 0.0
    %802 = vmatpush1.msra.mxu0 0.0
    %803 = vmatprep.subr.mxu0 0.0
    %804 = vmatpush1.msra.mxu0 0.0
    %805 = vmatprep.subr.mxu0 0.0
    %806 = vmatpush1.msra.mxu0 0.0
    %807 = vmatprep.subr.mxu0 0.0
    %808 = vmatpush1.msra.mxu0 0.0
    %809 = vmatprep.subr.mxu0 0.0
    %810 = vmatpush1.msra.mxu0 0.0
    %811 = vmatprep.subr.mxu0 0.0
    %812 = vmatpush1.msra.mxu0 0.0
    %813 = vmatprep.subr.mxu0 0.0
    %814 = vmatpush1.msra.mxu0 0.0
    %815 = vmatprep.subr.mxu0 0.0
    %816 = vmatpush1.msra.mxu0 0.0
    %817 = vmatprep.mubr.f32.mxu0 0.0
    %818 = vmatmul.mubr.f32.gmra.mrb[0].mxu0 %v751
    %v819 = vpop.f32.mrb[0].mxu0
    %v820 = vadd.f32 0.0, %v819
    %v821 = vpop.f32.mrb[0].mxu0
    %822 = vdwg.mxu0
    %v823 = vadd.f32 %v747, %v820
    %v824 = vmul.f32 %v823, %v194
    %v825 = vxor.u32 %v824, 2147483648
    %v826 = vmul.f32 %v825, 1.442695
    %v827 = vpow.pop %v826
    %v828 = vadd.f32 %v827, 1.0
    %v829 = vrcp.pop %v828
    %v830 = vmul.f32 1.0, %v829
    %v831 = vmul.f32 %v830, %v194
    %v832 = vadd.f32 %v831, %v195
    %v833 = vmul.f32 %v832, %v734
    %835 = vrot.lane.b32.xlu0 %v832, 64
    %v836 = vpop.permute.xlu0 %835
    %v838 = vmul.f32 %v832, %v836
    %840 = vrot.lane.b32.xlu0 %v838, 32
    %v841 = vpop.permute.xlu0 %840
    %v843 = vadd.f32 %v833, %v841
    %v844 = vtanh.pop %v843
    %846 = vrot.lane.b32.xlu0 %v844, 64
    %v847 = vpop.permute.xlu0 %846
    %v849 = vmul.f32 %v832, %v847
    %v850 = vtanh.pop %v849
    %852 = vrot.lane.b32.xlu0 %v850, 32
    %v853 = vpop.permute.xlu0 %852
    %855 = vst.msk [vmem:[#allocation12 + $0xa] sm:$0x3] %vm309, %v853
    %v856 = vld [vmem:[#allocation2 + $0xc] sm:$0x3]
    %858 = vrot.lane.b32.xlu0 %v849, 32
    %v859 = vpop.permute.xlu0 %858
    %v860 = vsel %vm199, %v859, 0
    %862 = vmatprep.subr.mxu0 0.0
    %863 = vmatpush1.msra.mxu0 %v185
    %864 = vmatprep.subr.mxu0 0.0
    %865 = vmatpush1.msra.mxu0 %v186
    %866 = vmatprep.subr.mxu0 0.0
    %867 = vmatpush1.msra.mxu0 %v187
    %868 = vmatprep.subr.mxu0 0.0
    %869 = vmatpush1.msra.mxu0 %v188
    %870 = vmatprep.subr.mxu0 0.0
    %871 = vmatpush1.msra.mxu0 0.0
    %872 = vmatprep.subr.mxu0 0.0
    %873 = vmatpush1.msra.mxu0 0.0
    %874 = vmatprep.subr.mxu0 0.0
    %875 = vmatpush1.msra.mxu0 0.0
    %876 = vmatprep.subr.mxu0 0.0
    %877 = vmatpush1.msra.mxu0 0.0
    %878 = vmatprep.subr.mxu0 0.0
    %879 = vmatpush1.msra.mxu0 0.0
    %880 = vmatprep.subr.mxu0 0.0
    %881 = vmatpush1.msra.mxu0 0.0
    %882 = vmatprep.subr.mxu0 0.0
    %883 = vmatpush1.msra.mxu0 0.0
    %884 = vmatprep.subr.mxu0 0.0
    %885 = vmatpush1.msra.mxu0 0.0
    %886 = vmatprep.subr.mxu0 0.0
    %887 = vmatpush1.msra.mxu0 0.0
    %888 = vmatprep.subr.mxu0 0.0
    %889 = vmatpush1.msra.mxu0 0.0
    %890 = vmatprep.subr.mxu0 0.0
    %891 = vmatpush1.msra.mxu0 0.0
    %892 = vmatprep.subr.mxu0 0.0
    %893 = vmatpush1.msra.mxu0 0.0
    %894 = vmatprep.subr.mxu0 0.0
    %895 = vmatpush1.msra.mxu0 0.0
    %896 = vmatprep.subr.mxu0 0.0
    %897 = vmatpush1.msra.mxu0 0.0
    %898 = vmatprep.subr.mxu0 0.0
    %899 = vmatpush1.msra.mxu0 0.0
    %900 = vmatprep.subr.mxu0 0.0
    %901 = vmatpush1.msra.mxu0 0.0
    %902 = vmatprep.subr.mxu0 0.0
    %903 = vmatpush1.msra.mxu0 0.0
    %904 = vmatprep.subr.mxu0 0.0
    %905 = vmatpush1.msra.mxu0 0.0
    %906 = vmatprep.subr.mxu0 0.0
    %907 = vmatpush1.msra.mxu0 0.0
    %908 = vmatprep.subr.mxu0 0.0
    %909 = vmatpush1.msra.mxu0 0.0
    %910 = vmatprep.subr.mxu0 0.0
    %911 = vmatpush1.msra.mxu0 0.0
    %912 = vmatprep.subr.mxu0 0.0
    %913 = vmatpush1.msra.mxu0 0.0
    %914 = vmatprep.subr.mxu0 0.0
    %915 = vmatpush1.msra.mxu0 0.0
    %916 = vmatprep.subr.mxu0 0.0
    %917 = vmatpush1.msra.mxu0 0.0
    %918 = vmatprep.subr.mxu0 0.0
    %919 = vmatpush1.msra.mxu0 0.0
    %920 = vmatprep.subr.mxu0 0.0
    %921 = vmatpush1.msra.mxu0 0.0
    %922 = vmatprep.subr.mxu0 0.0
    %923 = vmatpush1.msra.mxu0 0.0
    %924 = vmatprep.subr.mxu0 0.0
    %925 = vmatpush1.msra.mxu0 0.0
    %926 = vmatprep.mubr.f32.mxu0 0.0
    %927 = vmatmul.mubr.f32.gmra.mrb[0].mxu0 %v860
    %v928 = vpop.f32.mrb[0].mxu0
    %v929 = vadd.f32 0.0, %v928
    %v930 = vpop.f32.mrb[0].mxu0
    %931 = vdwg.mxu0
    %v932 = vadd.f32 %v856, %v929
    %v933 = vmul.f32 %v932, %v194
    %v934 = vxor.u32 %v933, 2147483648
    %v935 = vmul.f32 %v934, 1.442695
    %v936 = vpow.pop %v935
    %v937 = vadd.f32 %v936, 1.0
    %v938 = vrcp.pop %v937
    %v939 = vmul.f32 1.0, %v938
    %v940 = vmul.f32 %v939, %v194
    %v941 = vadd.f32 %v940, %v195
    %v942 = vmul.f32 %v941, %v843
    %944 = vrot.lane.b32.xlu0 %v941, 64
    %v945 = vpop.permute.xlu0 %944
    %v947 = vmul.f32 %v941, %v945
    %949 = vrot.lane.b32.xlu0 %v947, 32
    %v950 = vpop.permute.xlu0 %949
    %v952 = vadd.f32 %v942, %v950
    %v953 = vtanh.pop %v952
    %955 = vrot.lane.b32.xlu0 %v953, 64
    %v956 = vpop.permute.xlu0 %955
    %v958 = vmul.f32 %v941, %v956
    %v959 = vtanh.pop %v958
    %961 = vrot.lane.b32.xlu0 %v959, 32
    %v962 = vpop.permute.xlu0 %961
    %964 = vst.msk [vmem:[#allocation12 + $0xc] sm:$0x3] %vm309, %v962
    %v965 = vld [vmem:[#allocation2 + $0xe] sm:$0x3]
    %967 = vrot.lane.b32.xlu0 %v958, 32
    %v968 = vpop.permute.xlu0 %967
    %v969 = vsel %vm199, %v968, 0
    %971 = vmatprep.subr.mxu0 0.0
    %972 = vmatpush1.msra.mxu0 %v185
    %973 = vmatprep.subr.mxu0 0.0
    %974 = vmatpush1.msra.mxu0 %v186
    %975 = vmatprep.subr.mxu0 0.0
    %976 = vmatpush1.msra.mxu0 %v187
    %977 = vmatprep.subr.mxu0 0.0
    %978 = vmatpush1.msra.mxu0 %v188
    %979 = vmatprep.subr.mxu0 0.0
    %980 = vmatpush1.msra.mxu0 0.0
    %981 = vmatprep.subr.mxu0 0.0
    %982 = vmatpush1.msra.mxu0 0.0
    %983 = vmatprep.subr.mxu0 0.0
    %984 = vmatpush1.msra.mxu0 0.0
    %985 = vmatprep.subr.mxu0 0.0
    %986 = vmatpush1.msra.mxu0 0.0
    %987 = vmatprep.subr.mxu0 0.0
    %988 = vmatpush1.msra.mxu0 0.0
    %989 = vmatprep.subr.mxu0 0.0
    %990 = vmatpush1.msra.mxu0 0.0
    %991 = vmatprep.subr.mxu0 0.0
    %992 = vmatpush1.msra.mxu0 0.0
    %993 = vmatprep.subr.mxu0 0.0
    %994 = vmatpush1.msra.mxu0 0.0
    %995 = vmatprep.subr.mxu0 0.0
    %996 = vmatpush1.msra.mxu0 0.0
    %997 = vmatprep.subr.mxu0 0.0
    %998 = vmatpush1.msra.mxu0 0.0
    %999 = vmatprep.subr.mxu0 0.0
    %1000 = vmatpush1.msra.mxu0 0.0
    %1001 = vmatprep.subr.mxu0 0.0
    %1002 = vmatpush1.msra.mxu0 0.0
    %1003 = vmatprep.subr.mxu0 0.0
    %1004 = vmatpush1.msra.mxu0 0.0
    %1005 = vmatprep.subr.mxu0 0.0
    %1006 = vmatpush1.msra.mxu0 0.0
    %1007 = vmatprep.subr.mxu0 0.0
    %1008 = vmatpush1.msra.mxu0 0.0
    %1009 = vmatprep.subr.mxu0 0.0
    %1010 = vmatpush1.msra.mxu0 0.0
    %1011 = vmatprep.subr.mxu0 0.0
    %1012 = vmatpush1.msra.mxu0 0.0
    %1013 = vmatprep.subr.mxu0 0.0
    %1014 = vmatpush1.msra.mxu0 0.0
    %1015 = vmatprep.subr.mxu0 0.0
    %1016 = vmatpush1.msra.mxu0 0.0
    %1017 = vmatprep.subr.mxu0 0.0
    %1018 = vmatpush1.msra.mxu0 0.0
    %1019 = vmatprep.subr.mxu0 0.0
    %1020 = vmatpush1.msra.mxu0 0.0
    %1021 = vmatprep.subr.mxu0 0.0
    %1022 = vmatpush1.msra.mxu0 0.0
    %1023 = vmatprep.subr.mxu0 0.0
    %1024 = vmatpush1.msra.mxu0 0.0
    %1025 = vmatprep.subr.mxu0 0.0
    %1026 = vmatpush1.msra.mxu0 0.0
    %1027 = vmatprep.subr.mxu0 0.0
    %1028 = vmatpush1.msra.mxu0 0.0
    %1029 = vmatprep.subr.mxu0 0.0
    %1030 = vmatpush1.msra.mxu0 0.0
    %1031 = vmatprep.subr.mxu0 0.0
    %1032 = vmatpush1.msra.mxu0 0.0
    %1033 = vmatprep.subr.mxu0 0.0
    %1034 = vmatpush1.msra.mxu0 0.0
    %1035 = vmatprep.mubr.f32.mxu0 0.0
    %1036 = vmatmul.mubr.f32.gmra.mrb[0].mxu0 %v969
    %v1037 = vpop.f32.mrb[0].mxu0
    %v1038 = vadd.f32 0.0, %v1037
    %v1039 = vpop.f32.mrb[0].mxu0
    %1040 = vdwg.mxu0
    %v1041 = vadd.f32 %v965, %v1038
    %v1042 = vmul.f32 %v1041, %v194
    %v1043 = vxor.u32 %v1042, 2147483648
    %v1044 = vmul.f32 %v1043, 1.442695
    %v1045 = vpow.pop %v1044
    %v1046 = vadd.f32 %v1045, 1.0
    %v1047 = vrcp.pop %v1046
    %v1048 = vmul.f32 1.0, %v1047
    %v1049 = vmul.f32 %v1048, %v194
    %v1050 = vadd.f32 %v1049, %v195
    %v1051 = vmul.f32 %v1050, %v952
    %1053 = vrot.lane.b32.xlu0 %v1050, 64
    %v1054 = vpop.permute.xlu0 %1053
    %v1056 = vmul.f32 %v1050, %v1054
    %1058 = vrot.lane.b32.xlu0 %v1056, 32
    %v1059 = vpop.permute.xlu0 %1058
    %v1061 = vadd.f32 %v1051, %v1059
    %v1062 = vtanh.pop %v1061
    %1064 = vrot.lane.b32.xlu0 %v1062, 64
    %v1065 = vpop.permute.xlu0 %1064
    %v1067 = vmul.f32 %v1050, %v1065
    %v1068 = vtanh.pop %v1067
    %1070 = vrot.lane.b32.xlu0 %v1068, 32
    %v1071 = vpop.permute.xlu0 %1070
    %1073 = vst.msk [vmem:[#allocation12 + $0xe] sm:$0x3] %vm309, %v1071
    %v1074 = vld [vmem:[#allocation12 + $0xe] sm:$0x3]
    %v1075 = vld [vmem:[#allocation9] sm:$0xff]
    %v1076 = vld [vmem:[#allocation9 + $0x8] sm:$0xff]
    %v1077 = vld [vmem:[#allocation9 + $0x10] sm:$0xff]
    %v1078 = vld [vmem:[#allocation9 + $0x18] sm:$0xff]
    %v1079 = vld [vmem:[%s7] sm:$0x1]
    %v1081 = vlaneseq
    %v1082 = vshrl.u32 %v1081, 7
    %v1083 = vsub.s32 0, %v1082
    %v1084 = vrot.slane %v1079, %v1083
    %v1087 = vsel %vm199, %v1074, 0
    %1089 = vmatprep.subr.mxu0 0.0
    %1090 = vmatpush1.msra.mxu0 %v1075
    %1091 = vmatprep.subr.mxu0 0.0
    %1092 = vmatpush1.msra.mxu0 %v1076
    %1093 = vmatprep.subr.mxu0 0.0
    %1094 = vmatpush1.msra.mxu0 %v1077
    %1095 = vmatprep.subr.mxu0 0.0
    %1096 = vmatpush1.msra.mxu0 %v1078
    %1097 = vmatprep.subr.mxu0 0.0
    %1098 = vmatpush1.msra.mxu0 0.0
    %1099 = vmatprep.subr.mxu0 0.0
    %1100 = vmatpush1.msra.mxu0 0.0
    %1101 = vmatprep.subr.mxu0 0.0
    %1102 = vmatpush1.msra.mxu0 0.0
    %1103 = vmatprep.subr.mxu0 0.0
    %1104 = vmatpush1.msra.mxu0 0.0
    %1105 = vmatprep.subr.mxu0 0.0
    %1106 = vmatpush1.msra.mxu0 0.0
    %1107 = vmatprep.subr.mxu0 0.0
    %1108 = vmatpush1.msra.mxu0 0.0
    %1109 = vmatprep.subr.mxu0 0.0
    %1110 = vmatpush1.msra.mxu0 0.0
    %1111 = vmatprep.subr.mxu0 0.0
    %1112 = vmatpush1.msra.mxu0 0.0
    %1113 = vmatprep.subr.mxu0 0.0
    %1114 = vmatpush1.msra.mxu0 0.0
    %1115 = vmatprep.subr.mxu0 0.0
    %1116 = vmatpush1.msra.mxu0 0.0
    %1117 = vmatprep.subr.mxu0 0.0
    %1118 = vmatpush1.msra.mxu0 0.0
    %1119 = vmatprep.subr.mxu0 0.0
    %1120 = vmatpush1.msra.mxu0 0.0
    %1121 = vmatprep.subr.mxu0 0.0
    %1122 = vmatpush1.msra.mxu0 0.0
    %1123 = vmatprep.subr.mxu0 0.0
    %1124 = vmatpush1.msra.mxu0 0.0
    %1125 = vmatprep.subr.mxu0 0.0
    %1126 = vmatpush1.msra.mxu0 0.0
    %1127 = vmatprep.subr.mxu0 0.0
    %1128 = vmatpush1.msra.mxu0 0.0
    %1129 = vmatprep.subr.mxu0 0.0
    %1130 = vmatpush1.msra.mxu0 0.0
    %1131 = vmatprep.subr.mxu0 0.0
    %1132 = vmatpush1.msra.mxu0 0.0
    %1133 = vmatprep.subr.mxu0 0.0
    %1134 = vmatpush1.msra.mxu0 0.0
    %1135 = vmatprep.subr.mxu0 0.0
    %1136 = vmatpush1.msra.mxu0 0.0
    %1137 = vmatprep.subr.mxu0 0.0
    %1138 = vmatpush1.msra.mxu0 0.0
    %1139 = vmatprep.subr.mxu0 0.0
    %1140 = vmatpush1.msra.mxu0 0.0
    %1141 = vmatprep.subr.mxu0 0.0
    %1142 = vmatpush1.msra.mxu0 0.0
    %1143 = vmatprep.subr.mxu0 0.0
    %1144 = vmatpush1.msra.mxu0 0.0
    %1145 = vmatprep.subr.mxu0 0.0
    %1146 = vmatpush1.msra.mxu0 0.0
    %1147 = vmatprep.subr.mxu0 0.0
    %1148 = vmatpush1.msra.mxu0 0.0
    %1149 = vmatprep.subr.mxu0 0.0
    %1150 = vmatpush1.msra.mxu0 0.0
    %1151 = vmatprep.subr.mxu0 0.0
    %1152 = vmatpush1.msra.mxu0 0.0
    %1153 = vmatprep.mubr.f32.mxu0 0.0
    %1154 = vmatmul.mubr.f32.gmra.mrb[0].mxu0 %v1087
    %v1155 = vpop.f32.mrb[0].mxu0
    %v1156 = vadd.f32 %v1084, %v1155
    %v1157 = vpop.f32.mrb[0].mxu0
    %1158 = vdwg.mxu0
    %v1159 = vld [vmem:[%s8] sm:$0xff]
    %v1160 = vld [vmem:[%s8 + $0x8] sm:$0xff]
    %v1161 = vld [vmem:[%s8 + $0x10] sm:$0xff]
    %v1162 = vld [vmem:[%s8 + $0x18] sm:$0xff]
    %v1163 = vld [vmem:[%s9] sm:$0x1]
    %v1165 = vlaneseq
    %v1166 = vshrl.u32 %v1165, 7
    %v1167 = vsub.s32 0, %v1166
    %v1168 = vrot.slane %v1163, %v1167
    %v1171 = vsel %vm199, %v1156, 0
    %1173 = vmatprep.subr.mxu0 0.0
    %1174 = vmatpush1.msra.mxu0 %v1159
    %1175 = vmatprep.subr.mxu0 0.0
    %1176 = vmatpush1.msra.mxu0 %v1160
    %1177 = vmatprep.subr.mxu0 0.0
    %1178 = vmatpush1.msra.mxu0 %v1161
    %1179 = vmatprep.subr.mxu0 0.0
    %1180 = vmatpush1.msra.mxu0 %v1162
    %1181 = vmatprep.subr.mxu0 0.0
    %1182 = vmatpush1.msra.mxu0 0.0
    %1183 = vmatprep.subr.mxu0 0.0
    %1184 = vmatpush1.msra.mxu0 0.0
    %1185 = vmatprep.subr.mxu0 0.0
    %1186 = vmatpush1.msra.mxu0 0.0
    %1187 = vmatprep.subr.mxu0 0.0
    %1188 = vmatpush1.msra.mxu0 0.0
    %1189 = vmatprep.subr.mxu0 0.0
    %1190 = vmatpush1.msra.mxu0 0.0
    %1191 = vmatprep.subr.mxu0 0.0
    %1192 = vmatpush1.msra.mxu0 0.0
    %1193 = vmatprep.subr.mxu0 0.0
    %1194 = vmatpush1.msra.mxu0 0.0
    %1195 = vmatprep.subr.mxu0 0.0
    %1196 = vmatpush1.msra.mxu0 0.0
    %1197 = vmatprep.subr.mxu0 0.0
    %1198 = vmatpush1.msra.mxu0 0.0
    %1199 = vmatprep.subr.mxu0 0.0
    %1200 = vmatpush1.msra.mxu0 0.0
    %1201 = vmatprep.subr.mxu0 0.0
    %1202 = vmatpush1.msra.mxu0 0.0
    %1203 = vmatprep.subr.mxu0 0.0
    %1204 = vmatpush1.msra.mxu0 0.0
    %1205 = vmatprep.subr.mxu0 0.0
    %1206 = vmatpush1.msra.mxu0 0.0
    %1207 = vmatprep.subr.mxu0 0.0
    %1208 = vmatpush1.msra.mxu0 0.0
    %1209 = vmatprep.subr.mxu0 0.0
    %1210 = vmatpush1.msra.mxu0 0.0
    %1211 = vmatprep.subr.mxu0 0.0
    %1212 = vmatpush1.msra.mxu0 0.0
    %1213 = vmatprep.subr.mxu0 0.0
    %1214 = vmatpush1.msra.mxu0 0.0
    %1215 = vmatprep.subr.mxu0 0.0
    %1216 = vmatpush1.msra.mxu0 0.0
    %1217 = vmatprep.subr.mxu0 0.0
    %1218 = vmatpush1.msra.mxu0 0.0
    %1219 = vmatprep.subr.mxu0 0.0
    %1220 = vmatpush1.msra.mxu0 0.0
    %1221 = vmatprep.subr.mxu0 0.0
    %1222 = vmatpush1.msra.mxu0 0.0
    %1223 = vmatprep.subr.mxu0 0.0
    %1224 = vmatpush1.msra.mxu0 0.0
    %1225 = vmatprep.subr.mxu0 0.0
    %1226 = vmatpush1.msra.mxu0 0.0
    %1227 = vmatprep.subr.mxu0 0.0
    %1228 = vmatpush1.msra.mxu0 0.0
    %1229 = vmatprep.subr.mxu0 0.0
    %1230 = vmatpush1.msra.mxu0 0.0
    %1231 = vmatprep.subr.mxu0 0.0
    %1232 = vmatpush1.msra.mxu0 0.0
    %1233 = vmatprep.subr.mxu0 0.0
    %1234 = vmatpush1.msra.mxu0 0.0
    %1235 = vmatprep.subr.mxu0 0.0
    %1236 = vmatpush1.msra.mxu0 0.0
    %1237 = vmatprep.mubr.f32.mxu0 0.0
    %1238 = vmatmul.mubr.f32.gmra.mrb[0].mxu0 %v1171
    %v1239 = vpop.f32.mrb[0].mxu0
    %v1240 = vadd.f32 %v1168, %v1239
    %v1241 = vpop.f32.mrb[0].mxu0
    %1242 = vdwg.mxu0
    %vm1243 = vcmask 58368
    %1244 = vst.msk [vmem:[#allocation11] sm:$0x3] %vm1243, %v1240
    // Predicated region
    $region58: #{tpu_custom_call.1} parent=1 // pred_check
      _
    $region59: #{tpu_custom_call.1} parent=1 // pred_check_branch
      %1246 = sbr.rel (0) target = $region61
    $region60: #{tpu_custom_call.1} parent=1 // pred_region
      %s1248 = ssub.s32 32, 32
      %1249 = vsyncadd [#allocation5], %s1248
      %s1251 = sshll.u32 [#allocation11], 4
      %s1252 = int_to_ptr.vmem [resolvable:$true] %s1251
      %1254 = dma.vmem_to_hbm [thread:$0]  %s1252, 32, %s10, [#allocation5]
    $region61: #{tpu_custom_call.1} parent=1 // pred_fallthru
      _
    // Predicated region
    $region62: #{tpu_custom_call.1} parent=1 // pred_check
      _
    $region63: #{tpu_custom_call.1} parent=1 // pred_check_branch
      %1256 = sbr.rel (0) target = $region65
    $region64: #{tpu_custom_call.1} parent=1 // pred_region
      %s1258 = ssub.s32 256, 256
      %1259 = vsyncadd [#allocation13], %s1258
      %s1260 = sshll.u32 [#allocation12], 4
      %s1261 = int_to_ptr.vmem [resolvable:$true] %s1260
      %1266 = dma.vmem_to_hbm [thread:$0]  %s1261, 256, %s11, [#allocation13], 128, 128, 8
    $region65: #{tpu_custom_call.1} parent=1 // pred_fallthru
      _
    // Predicated region
    $region66: #{tpu_custom_call.1} parent=1 // pred_check
      _
    $region67: #{tpu_custom_call.1} parent=1 // pred_check_branch
      %1268 = sbr.rel (0) target = $region69
    $region68: #{tpu_custom_call.1} parent=1 // pred_region
      %1269 = dma.done [#allocation5], 32
    $region69: #{tpu_custom_call.1} parent=1 // pred_fallthru
      _
    // Predicated region
    $region70: #{tpu_custom_call.1} parent=1 // pred_check
      _
    $region71: #{tpu_custom_call.1} parent=1 // pred_check_branch
      %1271 = sbr.rel (0) target = $region73
    $region72: #{tpu_custom_call.1} parent=1 // pred_region
      %1272 = dma.done [#allocation13], 256
    $region73: #{tpu_custom_call.1} parent=1 // pred_fallthru
      _
    %1273 = vsyncpa [#allocation4], 1
    %1274 = vsyncpa [#allocation7], 1
    %1275 = vsyncpa [#allocation10], 1
    %1276 = vsyncpa [#allocation5], 1
    %1277 = vsyncpa [#allocation13], 1

</llo_original>
